<compile_context>
chip_gen: v7x
topology: tpu7x:2x2x1
jax: 0.10.0
libtpu: 0.0.40
codegen_flags: <defaults>
</compile_context>

<pallas_src>
import functools
import math

import numpy as np
import jax
import jax.numpy as jnp
from jax import lax
from jax.experimental import pallas as pl
from jax.experimental.pallas import tpu as pltpu

_EPS = 1e-6
_JIT_EPS = 0.0001 * 1.2345678
_PI = math.pi
_TWO_PI = 2.0 * math.pi
_HALF_PI = 0.5 * math.pi
_INV_2PI = 1.0 / (2.0 * math.pi)
_DEG2RAD = math.pi / 180.0
_LOG_2PI = math.log(2.0 * math.pi)
_LOG_8PI = math.log(8.0 * math.pi)
_LANES = 128

# Degree-11 odd minimax polynomial coefficients for atan(z), z in [0, 1].
_ATAN_C = (0.99997726, -0.33262347, 0.19354346, -0.11643287, 0.05265332, -0.01172120)


# --------------------------------------------------------------------------------------
# Kernel-side helpers (all operate on dense (tile_r, 128) feature planes)
# --------------------------------------------------------------------------------------
def _inv(x):
    """1/x via EUP approx reciprocal + one VPU Newton-Raphson step (~f32 accuracy)."""
    r = pl.reciprocal(x, approx=True)
    return r * (2.0 - x * r)


def _sincos(x):
    """sin(x), cos(x) for x in (-2*pi, 2*pi): symmetry folding to [0, pi/2] + Taylor
    polynomials (deg-11 sin / deg-12 cos).  Pure VALU work; keeps the single EUP slot free."""
    ax = jnp.abs(x)
    fold_pi = ax > _PI
    a1 = jnp.where(fold_pi, _TWO_PI - ax, ax)        # [0, pi]
    fold_half = a1 > _HALF_PI
    a2 = jnp.where(fold_half, _PI - a1, a1)          # [0, pi/2]
    z = a2 * a2
    s = -1.0 / 39916800.0
    s = s * z + 1.0 / 362880.0
    s = s * z - 1.0 / 5040.0
    s = s * z + 1.0 / 120.0
    s = s * z - 1.0 / 6.0
    s = s * z + 1.0
    s = s * a2                                       # sin(a2) == sin(a1)
    c = 1.0 / 479001600.0
    c = c * z - 1.0 / 3628800.0
    c = c * z + 1.0 / 40320.0
    c = c * z - 1.0 / 720.0
    c = c * z + 1.0 / 24.0
    c = c * z - 0.5
    c = c * z + 1.0                                  # cos(a2)
    cos_x = jnp.where(fold_half, -c, c)              # cos(a1) == cos(ax) == cos(x)
    sin_ax = jnp.where(fold_pi, -s, s)               # sin(ax)
    sin_x = jnp.where(x < 0.0, -sin_ax, sin_ax)
    return sin_x, cos_x


def _atan_ratio(num, den):
    """arctan(num/den) for num, den > 0: range-reduce to [0,1], odd deg-11 minimax poly."""
    lo = jnp.minimum(num, den)
    hi = jnp.maximum(num, den)
    z = lo * _inv(hi)
    z2 = z * z
    c1, c3, c5, c7, c9, c11 = _ATAN_C
    p = c11
    p = p * z2 + c9
    p = p * z2 + c7
    p = p * z2 + c5
    p = p * z2 + c3
    p = p * z2 + c1
    at = p * z
    return jnp.where(num > den, _HALF_PI - at, at)


def _kent_params(w, h):
    varphi = h * h * (1.0 / 12.0) + _EPS
    vartheta = w * w * (1.0 / 12.0) + _EPS
    inv_phi = _inv(varphi)
    inv_theta = _inv(vartheta)
    kappa = 0.5 * (inv_phi + inv_theta)
    beta = jnp.abs(0.25 * (inv_theta - inv_phi))
    return kappa, beta


def _side_stats(kappa, beta):
    """Normalizer pieces and E[xx^T] eigenvalues for one Kent distribution.

    Exp/log round-trips of the torch reference are cancelled algebraically (kappa cancels
    exactly in c_k - c, c_kk - c, c_be - c), removing the EUP transcendentals and the f32
    cancellation of large kappa.  Minor eps-placement divergences from torch (log(prod+eps)
    vs log(km)+log(kp), dropped exp(-eps) factors) are negligible for valid bfov params."""
    km = kappa - 2.0 * beta
    kp = kappa + 2.0 * beta
    prod = km * kp
    prod_eps = prod + _EPS
    ip = _inv(prod_eps)
    # TODO(synk): torch raises ValueError if any kappa <= 2*beta (data-dependent error, not
    # expressible in a TPU kernel); bfov-derived Kent params always satisfy kappa > 2*beta.
    lam1 = (jnp.maximum(_TWO_PI * (prod - kappa), 0.0) + _EPS) * ip * _INV_2PI
    one_m_ekk = ip * (2.0 * kappa - (2.0 * kappa * kappa + 4.0 * beta * beta) * ip)
    e_be = 4.0 * (beta + _EPS) * ip
    lam2 = 0.5 * (one_m_ekk + e_be)
    lam3 = 0.5 * (one_m_ekk - e_be)
    return prod_eps, ip, lam1, lam2, lam3, e_be


def _per_box_loss(pred_ref, tgt_ref):
    """Per-box DecodedKentRawLoss over one (4, tile_r, 128) pair of feature planes."""
    px, py, pw, ph = pred_ref[0], pred_ref[1], pred_ref[2], pred_ref[3]
    tx, ty, tw, th = tgt_ref[0], tgt_ref[1], tgt_ref[2], tgt_ref[3]

    # ---- jiter_spherical_bboxes (degrees): OR of per-feature compares, no sublane reduce ----
    similar = ((jnp.abs(px - tx) < _JIT_EPS) | (jnp.abs(py - ty) < _JIT_EPS) |
               (jnp.abs(pw - tw) < _JIT_EPS) | (jnp.abs(ph - th) < _JIT_EPS))
    shift_p = jnp.where(similar, -2.0 * _JIT_EPS, 0.0)
    shift_t = jnp.where(similar, _JIT_EPS, 0.0)
    px = jnp.clip(px + shift_p, 2.0 * _JIT_EPS, 360.0 - _JIT_EPS)
    py = jnp.clip(py + shift_p, 2.0 * _JIT_EPS, 180.0 - _JIT_EPS)
    pw = jnp.clip(pw + shift_p, 2.0 * _JIT_EPS, 180.0 - _JIT_EPS)
    ph = jnp.clip(ph + shift_p, 2.0 * _JIT_EPS, 180.0 - _JIT_EPS)
    tx = jnp.clip(tx + shift_t, _JIT_EPS, 360.0 - 2.0 * _JIT_EPS)
    ty = jnp.clip(ty + shift_t, _JIT_EPS, 180.0 - 2.0 * _JIT_EPS)
    tw = jnp.clip(tw + shift_t, _JIT_EPS, 180.0 - 2.0 * _JIT_EPS)
    th = jnp.clip(th + shift_t, _JIT_EPS, 180.0 - 2.0 * _JIT_EPS)

    # ---- trig: only alpha_p, alpha_t and (eta_p - eta_t) are ever needed ----
    sap, cap = _sincos(py * _DEG2RAD)
    sat, cat = _sincos(ty * _DEG2RAD)
    sde, cde = _sincos((px - tx) * _DEG2RAD)

    # ---- Kent parameters per side ----
    wp = sap * (pw * _DEG2RAD)
    hp = ph * _DEG2RAD
    wt = sat * (tw * _DEG2RAD)
    ht = th * _DEG2RAD
    pk, pb = _kent_params(wp, hp)
    tk, tb = _kent_params(wt, ht)

    # ---- frame dot products D[i][j] = gp_{i+1}.gt_{j+1} in closed form (no gammas) ----
    d00 = cap * cat + sap * sat * cde
    sq01 = (sap * cat * cde - cap * sat) ** 2
    sq02 = (sap * sde) ** 2
    sq10 = (cap * sat * cde - sap * cat) ** 2
    sq11 = (sap * sat + cap * cat * cde) ** 2
    sq12 = (cap * sde) ** 2
    sq20 = (sat * sde) ** 2
    sq21 = (cat * sde) ** 2
    sq22 = cde * cde

    # ---- side statistics, shared by both KLD directions ----
    _, ipp, l1p, l2p, l3p, ebp = _side_stats(pk, pb)
    prod_t, _, l1t, l2t, l3t, ebt = _side_stats(tk, tb)

    # c_pred - c_target collapsed to one log of a ratio (reuses inv_prod_p)
    dc = (pk - tk) + 0.5 * jnp.log(prod_t * ipp)

    # ---- symmetric KLDs via the spectral form (Q rows orthonormal) ----
    # TODO(synk): torch computes the KLD branch in float64 (.double()); this kernel is float32.
    kld_pt = (dc + l1t * (tk - pk * d00) + tb * ebt
              - pb * (l1t * sq10 + l2t * sq11 + l3t * sq12)
              + pb * (l1t * sq20 + l2t * sq21 + l3t * sq22))
    kld_tp = (-dc + l1p * (pk - tk * d00) + pb * ebp
              - tb * (l1p * sq01 + l2p * sq11 + l3p * sq21)
              + tb * (l1p * sq02 + l2p * sq12 + l3p * sq22))
    kld_pt = jnp.maximum(kld_pt, 0.0)
    kld_tp = jnp.maximum(kld_tp, 0.0)
    jsd = 0.5 * (kld_pt + kld_tp)
    jsd_iou = _inv(1.0 + jsd)

    # ---- aspect-ratio consistency term ----
    at_p = _atan_ratio(wp, hp)
    at_t = _atan_ratio(wt, ht)
    dat = at_t - at_p
    v = (4.0 / (_PI * _PI)) * dat * dat
    alpha_v = v * _inv(1.0 - jsd_iou + v)
    return 1.0 - jsd_iou + alpha_v * v


# --------------------------------------------------------------------------------------
# Pallas kernels
# --------------------------------------------------------------------------------------
def _perbox_kernel(pred_ref, tgt_ref, loss_ref):
    loss_ref[...] = _per_box_loss(pred_ref, tgt_ref)


def _masked_sum_kernel(pred_ref, tgt_ref, psum_ref, *, n_boxes, tile_r):
    loss = _per_box_loss(pred_ref, tgt_ref)
    base = pl.program_id(0) * (tile_r * _LANES)
    row = lax.broadcasted_iota(jnp.int32, (tile_r, _LANES), 0)
    lane = lax.broadcasted_iota(jnp.int32, (tile_r, _LANES), 1)
    gidx = base + row * _LANES + lane
    masked = jnp.where(gidx < n_boxes, loss, 0.0)
    # (tile_r,128)->(tile_r//8,8,128) keeps native (8,128) tiles; axis-0 reduce is vreg adds.
    psum_ref[0] = jnp.sum(masked.reshape(tile_r // 8, 8, _LANES), axis=0)


def decoded_kent_raw_loss(pred, target, loss_weight=1.0, reduction="mean"):
    """pred/target: (N, 4) float32 spherical boxes [x_deg, y_deg, fov_w_deg, fov_h_deg]."""
    # TODO(synk): the optional `weight` / `avg_factor` re-weighting of @weighted_loss is not
    # implemented; this is the weight=None path used by the module's defaults.
    pred = jnp.asarray(pred, jnp.float32)
    target = jnp.asarray(target, jnp.float32)
    if pred.ndim == 1:
        pred = pred[None, :]
    if target.ndim == 1:
        target = target[None, :]
    n = pred.shape[0]

    rows = max(1, -(-n // _LANES))
    if rows <= 8:
        tile_r = 8                                   # single (8,128)-aligned tile
    else:
        # >= 2 tiles (both v7x TensorCores busy); cap at 256 rows so the ~30 live
        # (tile_r,128) f32 planes stay well under the 16 MiB v5e scoped-VMEM default.
        half = -(-rows // 2)
        tile_r = min(256, ((half + 7) // 8) * 8)
    rows_pad = -(-rows // tile_r) * tile_r
    num_tiles = rows_pad // tile_r
    n_pad = rows_pad * _LANES

    def pack(boxes, fill):
        cols = boxes.T                               # (4, n) feature-major
        if n_pad > n:
            cols = jnp.pad(cols, ((0, 0), (0, n_pad - n)), constant_values=fill)
        return cols.reshape(4, rows_pad, _LANES)

    # Distinct, benign fillers: padded lanes never trip the jitter path and stay finite;
    # they are masked (sum path) or sliced off (per-box path) anyway.
    p = pack(pred, 90.0)
    t = pack(target, 45.0)

    in_specs = [pl.BlockSpec((4, tile_r, _LANES), lambda i: (0, i, 0)),
                pl.BlockSpec((4, tile_r, _LANES), lambda i: (0, i, 0))]
    cparams = pltpu.CompilerParams(dimension_semantics=("parallel",))

    if reduction == "none":
        per_box = pl.pallas_call(
            _perbox_kernel,
            out_shape=jax.ShapeDtypeStruct((rows_pad, _LANES), jnp.float32),
            grid=(num_tiles,),
            in_specs=in_specs,
            out_specs=pl.BlockSpec((tile_r, _LANES), lambda i: (i, 0)),
            compiler_params=cparams,
        )(p, t)
        return loss_weight * per_box.reshape(-1)[:n]

    # mean / sum: masked partial-sum reduction fused into the kernel.
    psums = pl.pallas_call(
        functools.partial(_masked_sum_kernel, n_boxes=n, tile_r=tile_r),
        out_shape=jax.ShapeDtypeStruct((num_tiles, 8, _LANES), jnp.float32),
        grid=(num_tiles,),
        in_specs=in_specs,
        out_specs=pl.BlockSpec((1, 8, _LANES), lambda i: (i, 0, 0)),
        compiler_params=cparams,
    )(p, t)
    total = jnp.sum(psums)
    if reduction == "mean":
        total = total / n
    elif reduction != "sum":
        raise ValueError(f"unknown reduction: {reduction}")
    return loss_weight * total


# --------------------------------------------------------------------------------------
# Pure-JAX reference (direct port of the torch code, (N, 4) layout) for verification
# --------------------------------------------------------------------------------------
def _log_approximate_c(kappa, beta):
    product = (kappa - 2.0 * beta) * (kappa + 2.0 * beta) + _EPS
    return _LOG_2PI + kappa - 0.5 * jnp.log(product)


def _log_del_kappa(kappa, beta):
    arg_num = jnp.maximum(_TWO_PI * (kappa ** 2 - kappa - 4.0 * beta ** 2), 0.0)
    numerator = jnp.log(arg_num + _EPS) + kappa
    arg_den = jnp.maximum((kappa - 2.0 * beta) * (kappa + 2.0 * beta), 0.0)
    denominator = 1.5 * jnp.log(arg_den + _EPS)
    return numerator - denominator


def _log_del_2_kappa(kappa, beta):
    poly = (kappa ** 4 - 2.0 * kappa ** 3 + (2.0 - 8.0 * beta ** 2) * kappa ** 2
            + 8.0 * beta ** 2 * kappa + 16.0 * beta ** 4 + 4.0 * beta ** 2)
    inner = jnp.maximum(_TWO_PI * poly, _EPS)
    numerator = jnp.log(inner) + kappa
    denominator = 2.5 * (jnp.log(jnp.maximum(kappa - 2.0 * beta, _EPS))
                         + jnp.log(jnp.maximum(kappa + 2.0 * beta, _EPS))) + _EPS
    return numerator - denominator


def _log_del_beta(kappa, beta):
    numerator = _LOG_8PI + kappa + jnp.log(beta + _EPS)
    denominator = 1.5 * (jnp.log(kappa - 2.0 * beta) + jnp.log(kappa + 2.0 * beta)) + _EPS
    return numerator - denominator


def _bfov_to_kent(x_deg, y_deg, fov_w_deg, fov_h_deg):
    eta = _TWO_PI * (x_deg / 360.0)
    alpha = _PI * (y_deg / 180.0)
    w = jnp.sin(alpha) * (fov_w_deg * _PI / 180.0)
    h = fov_h_deg * _PI / 180.0
    varphi = h * h / 12.0 + _EPS
    vartheta = w * w / 12.0 + _EPS
    kappa = 0.5 * (1.0 / varphi + 1.0 / vartheta)
    beta = jnp.abs(0.25 * (1.0 / vartheta - 1.0 / varphi))
    return eta, alpha, kappa, beta, w, h


def _radians_to_Q_ref(eta, alpha):
    sa, ca = jnp.sin(alpha), jnp.cos(alpha)
    se, ce = jnp.sin(eta), jnp.cos(eta)
    z = jnp.zeros_like(eta)
    g1 = jnp.stack([ca, sa * ce, sa * se], axis=1)
    g2 = jnp.stack([-sa, ca * ce, ca * se], axis=1)
    g3 = jnp.stack([z, -se, ce], axis=1)
    return jnp.stack([g1, g2, g3], axis=2)


def _get_kld_ref(kent_pred, kent_target):
    eta_a, alpha_a, kappa_a, beta_a = [kent_target[:, i] for i in range(4)]
    eta_b, alpha_b, kappa_b, beta_b = [kent_pred[:, i] for i in range(4)]
    Qa = _radians_to_Q_ref(eta_a, alpha_a)
    Qb = _radians_to_Q_ref(eta_b, alpha_b)
    ga1, ga2, ga3 = Qa[:, :, 0], Qa[:, :, 1], Qa[:, :, 2]
    gb1, gb2, gb3 = Qb[:, :, 0], Qb[:, :, 1], Qb[:, :, 2]
    c_a = _log_approximate_c(kappa_a, beta_a)
    c_b = _log_approximate_c(kappa_b, beta_b)
    c_ka = _log_del_kappa(kappa_a, beta_a)
    c_kk = _log_del_2_kappa(kappa_a, beta_a)
    c_be = _log_del_beta(kappa_a, beta_a)
    lam = jnp.stack([jnp.exp(c_ka - c_a),
                     0.5 * (1 - jnp.exp(c_kk - c_a) + jnp.exp(c_be - c_a)),
                     0.5 * (1 - jnp.exp(c_kk - c_a) - jnp.exp(c_be - c_a))], axis=-1)
    ExxT = jnp.einsum("nim,nm,njm->nij", Qa, lam, Qa)
    Ex = jnp.exp(c_ka - c_a)[:, None] * ga1
    log_term = c_b - c_a
    ex_term = jnp.sum((kappa_a[:, None] * ga1 - kappa_b[:, None] * gb1) * Ex, axis=1)
    quad = lambda b, g: b * jnp.einsum("ni,nij,nj->n", g, ExxT, g)
    return (log_term + ex_term + quad(beta_a, ga2) - quad(beta_b, gb2)
            - quad(beta_a, ga3) + quad(beta_b, gb3))


def _ref_per_box_loss(pred, target):
    b1 = jnp.asarray(pred, jnp.float32)
    b2 = jnp.asarray(target, jnp.float32)
    similar = jnp.any(jnp.abs(b1 - b2) < _JIT_EPS, axis=1, keepdims=True)
    b1 = jnp.where(similar, b1 - 2 * _JIT_EPS, b1)
    b2 = jnp.where(similar, b2 + _JIT_EPS, b2)
    deg_pi = 180.0
    b1 = b1.at[:, 0].set(jnp.clip(b1[:, 0], 2 * _JIT_EPS, 2 * deg_pi - _JIT_EPS))
    b1 = b1.at[:, 1:4].set(jnp.clip(b1[:, 1:4], 2 * _JIT_EPS, deg_pi - _JIT_EPS))
    b2 = b2.at[:, 0].set(jnp.clip(b2[:, 0], _JIT_EPS, 2 * deg_pi - 2 * _JIT_EPS))
    b2 = b2.at[:, 1:4].set(jnp.clip(b2[:, 1:4], _JIT_EPS, deg_pi - 2 * _JIT_EPS))
    kp = jnp.stack(_bfov_to_kent(b1[:, 0], b1[:, 1], b1[:, 2], b1[:, 3]), axis=1)
    kt = jnp.stack(_bfov_to_kent(b2[:, 0], b2[:, 1], b2[:, 2], b2[:, 3]), axis=1)
    kld_pt = jnp.maximum(_get_kld_ref(kp[:, :4], kt[:, :4]), 0.0)
    kld_tp = jnp.maximum(_get_kld_ref(kt[:, :4], kp[:, :4]), 0.0)
    jsd = 0.5 * (kld_pt + kld_tp)
    jsd_iou = 1.0 / (1.0 + jsd)
    at_p = jnp.arctan(kp[:, 4] / kp[:, 5])
    at_t = jnp.arctan(kt[:, 4] / kt[:, 5])
    v = 4.0 / (_PI ** 2) * (at_t - at_p) ** 2
    alpha_v = v / (1.0 - jsd_iou + v)
    return 1.0 - jsd_iou + alpha_v * v


if __name__ == "__main__":
    key = jax.random.PRNGKey(0)

    def make_boxes(k, n):
        kx, ky, kw, kh = jax.random.split(k, 4)
        x = jax.random.uniform(kx, (n,), minval=10.0, maxval=350.0)
        y = jax.random.uniform(ky, (n,), minval=20.0, maxval=160.0)
        fw = jax.random.uniform(kw, (n,), minval=20.0, maxval=150.0)
        fh = jax.random.uniform(kh, (n,), minval=20.0, maxval=150.0)
        return jnp.stack([x, y, fw, fh], axis=1)

    k1, k2, k3, k4 = jax.random.split(key, 4)

    # Small case: N=8 boxes (single tile, lane padding + masking exercised).
    pred = make_boxes(k1, 8)
    target = make_boxes(k2, 8)
    loss_mean = jax.block_until_ready(decoded_kent_raw_loss(pred, target, reduction="mean"))
    per_box = jax.block_until_ready(decoded_kent_raw_loss(pred, target, reduction="none"))

    ref_per_box = np.asarray(_ref_per_box_loss(pred, target))
    assert np.all(np.isfinite(np.asarray(per_box))), "kernel produced non-finite per-box loss"
    assert np.isfinite(np.asarray(loss_mean)), "kernel produced non-finite mean loss"
    np.testing.assert_allclose(np.asarray(per_box), ref_per_box, rtol=2e-2, atol=5e-3)
    np.testing.assert_allclose(np.asarray(loss_mean), ref_per_box.mean(), rtol=2e-2, atol=5e-3)

    # Larger case: N=1500 -> multi-tile grid + cross-tile lane masking exercised.
    pred2 = make_boxes(k3, 1500)
    target2 = make_boxes(k4, 1500)
    loss_mean2 = jax.block_until_ready(decoded_kent_raw_loss(pred2, target2, reduction="mean"))
    ref_mean2 = float(jnp.mean(_ref_per_box_loss(pred2, target2)))
    np.testing.assert_allclose(np.asarray(loss_mean2), ref_mean2, rtol=2e-2, atol=5e-3)

    print("KERNEL_OK")
</pallas_src>

<mosaic_0001>
module attributes {stable_mosaic.version = 11 : i64} {
  func.func @_masked_sum_kernel(%arg0: i32, %arg1: memref<4x8x128xf32, #tpu.memory_space<vmem>>, %arg2: memref<4x8x128xf32, #tpu.memory_space<vmem>>, %arg3: memref<1x8x128xf32, #tpu.memory_space<vmem>>) attributes {dimension_semantics = [#tpu.dimension_semantics<parallel>], iteration_bounds = array<i64: 1>, scalar_prefetch = 0 : i64, scratch_operands = 0 : i64, tpu.core_type = #tpu.core_type<tc>, window_params = [{transform_indices = @transform_0, window_bounds = array<i64: 4, 8, 128>}, {transform_indices = @transform_1, window_bounds = array<i64: 4, 8, 128>}, {transform_indices = @transform_2, window_bounds = array<i64: 1, 8, 128>}]} {
    %c0 = arith.constant 0 : index
    %c0_0 = arith.constant 0 : index
    %c0_1 = arith.constant 0 : index
    %0 = vector.load %arg1[%c0, %c0_0, %c0_1] : memref<4x8x128xf32, #tpu.memory_space<vmem>>, vector<1x8x128xf32>
    %1 = vector.shape_cast %0 : vector<1x8x128xf32> to vector<8x128xf32>
    %c1 = arith.constant 1 : index
    %c0_2 = arith.constant 0 : index
    %c0_3 = arith.constant 0 : index
    %2 = vector.load %arg1[%c1, %c0_2, %c0_3] : memref<4x8x128xf32, #tpu.memory_space<vmem>>, vector<1x8x128xf32>
    %3 = vector.shape_cast %2 : vector<1x8x128xf32> to vector<8x128xf32>
    %c2 = arith.constant 2 : index
    %c0_4 = arith.constant 0 : index
    %c0_5 = arith.constant 0 : index
    %4 = vector.load %arg1[%c2, %c0_4, %c0_5] : memref<4x8x128xf32, #tpu.memory_space<vmem>>, vector<1x8x128xf32>
    %5 = vector.shape_cast %4 : vector<1x8x128xf32> to vector<8x128xf32>
    %c3 = arith.constant 3 : index
    %c0_6 = arith.constant 0 : index
    %c0_7 = arith.constant 0 : index
    %6 = vector.load %arg1[%c3, %c0_6, %c0_7] : memref<4x8x128xf32, #tpu.memory_space<vmem>>, vector<1x8x128xf32>
    %7 = vector.shape_cast %6 : vector<1x8x128xf32> to vector<8x128xf32>
    %c0_8 = arith.constant 0 : index
    %c0_9 = arith.constant 0 : index
    %c0_10 = arith.constant 0 : index
    %8 = vector.load %arg2[%c0_8, %c0_9, %c0_10] : memref<4x8x128xf32, #tpu.memory_space<vmem>>, vector<1x8x128xf32>
    %9 = vector.shape_cast %8 : vector<1x8x128xf32> to vector<8x128xf32>
    %c1_11 = arith.constant 1 : index
    %c0_12 = arith.constant 0 : index
    %c0_13 = arith.constant 0 : index
    %10 = vector.load %arg2[%c1_11, %c0_12, %c0_13] : memref<4x8x128xf32, #tpu.memory_space<vmem>>, vector<1x8x128xf32>
    %11 = vector.shape_cast %10 : vector<1x8x128xf32> to vector<8x128xf32>
    %c2_14 = arith.constant 2 : index
    %c0_15 = arith.constant 0 : index
    %c0_16 = arith.constant 0 : index
    %12 = vector.load %arg2[%c2_14, %c0_15, %c0_16] : memref<4x8x128xf32, #tpu.memory_space<vmem>>, vector<1x8x128xf32>
    %13 = vector.shape_cast %12 : vector<1x8x128xf32> to vector<8x128xf32>
    %c3_17 = arith.constant 3 : index
    %c0_18 = arith.constant 0 : index
    %c0_19 = arith.constant 0 : index
    %14 = vector.load %arg2[%c3_17, %c0_18, %c0_19] : memref<4x8x128xf32, #tpu.memory_space<vmem>>, vector<1x8x128xf32>
    %15 = vector.shape_cast %14 : vector<1x8x128xf32> to vector<8x128xf32>
    %16 = arith.subf %1, %9 : vector<8x128xf32>
    %17 = math.absf %16 : vector<8x128xf32>
    %cst = arith.constant 1.23456775E-4 : f32
    %18 = vector.broadcast %cst : f32 to vector<8x128xf32>
    %19 = arith.cmpf olt, %17, %18 : vector<8x128xf32>
    %20 = arith.subf %3, %11 : vector<8x128xf32>
    %21 = math.absf %20 : vector<8x128xf32>
    %cst_20 = arith.constant 1.23456775E-4 : f32
    %22 = vector.broadcast %cst_20 : f32 to vector<8x128xf32>
    %23 = arith.cmpf olt, %21, %22 : vector<8x128xf32>
    %24 = arith.ori %19, %23 : vector<8x128xi1>
    %25 = arith.subf %5, %13 : vector<8x128xf32>
    %26 = math.absf %25 : vector<8x128xf32>
    %cst_21 = arith.constant 1.23456775E-4 : f32
    %27 = vector.broadcast %cst_21 : f32 to vector<8x128xf32>
    %28 = arith.cmpf olt, %26, %27 : vector<8x128xf32>
    %29 = arith.ori %24, %28 : vector<8x128xi1>
    %30 = arith.subf %7, %15 : vector<8x128xf32>
    %31 = math.absf %30 : vector<8x128xf32>
    %cst_22 = arith.constant 1.23456775E-4 : f32
    %32 = vector.broadcast %cst_22 : f32 to vector<8x128xf32>
    %33 = arith.cmpf olt, %31, %32 : vector<8x128xf32>
    %34 = arith.ori %29, %33 : vector<8x128xi1>
    %cst_23 = arith.constant -2.46913551E-4 : f32
    %cst_24 = arith.constant 0.000000e+00 : f32
    %35 = vector.broadcast %cst_23 : f32 to vector<8x128xf32>
    %36 = vector.broadcast %cst_24 : f32 to vector<8x128xf32>
    %37 = arith.select %34, %35, %36 : vector<8x128xi1>, vector<8x128xf32>
    %cst_25 = arith.constant 1.23456775E-4 : f32
    %cst_26 = arith.constant 0.000000e+00 : f32
    %38 = vector.broadcast %cst_25 : f32 to vector<8x128xf32>
    %39 = vector.broadcast %cst_26 : f32 to vector<8x128xf32>
    %40 = arith.select %34, %38, %39 : vector<8x128xi1>, vector<8x128xf32>
    %41 = arith.addf %1, %37 : vector<8x128xf32>
    %cst_27 = arith.constant 2.46913551E-4 : f32
    %cst_28 = arith.constant 359.999878 : f32
    %42 = vector.broadcast %cst_27 : f32 to vector<8x128xf32>
    %43 = arith.maximumf %42, %41 : vector<8x128xf32>
    %44 = vector.broadcast %cst_28 : f32 to vector<8x128xf32>
    %45 = arith.minimumf %44, %43 : vector<8x128xf32>
    %46 = arith.addf %3, %37 : vector<8x128xf32>
    %cst_29 = arith.constant 2.46913551E-4 : f32
    %cst_30 = arith.constant 179.999878 : f32
    %47 = vector.broadcast %cst_29 : f32 to vector<8x128xf32>
    %48 = arith.maximumf %47, %46 : vector<8x128xf32>
    %49 = vector.broadcast %cst_30 : f32 to vector<8x128xf32>
    %50 = arith.minimumf %49, %48 : vector<8x128xf32>
    %51 = arith.addf %5, %37 : vector<8x128xf32>
    %cst_31 = arith.constant 2.46913551E-4 : f32
    %cst_32 = arith.constant 179.999878 : f32
    %52 = vector.broadcast %cst_31 : f32 to vector<8x128xf32>
    %53 = arith.maximumf %52, %51 : vector<8x128xf32>
    %54 = vector.broadcast %cst_32 : f32 to vector<8x128xf32>
    %55 = arith.minimumf %54, %53 : vector<8x128xf32>
    %56 = arith.addf %7, %37 : vector<8x128xf32>
    %cst_33 = arith.constant 2.46913551E-4 : f32
    %cst_34 = arith.constant 179.999878 : f32
    %57 = vector.broadcast %cst_33 : f32 to vector<8x128xf32>
    %58 = arith.maximumf %57, %56 : vector<8x128xf32>
    %59 = vector.broadcast %cst_34 : f32 to vector<8x128xf32>
    %60 = arith.minimumf %59, %58 : vector<8x128xf32>
    %61 = arith.addf %9, %40 : vector<8x128xf32>
    %cst_35 = arith.constant 1.23456775E-4 : f32
    %cst_36 = arith.constant 359.999756 : f32
    %62 = vector.broadcast %cst_35 : f32 to vector<8x128xf32>
    %63 = arith.maximumf %62, %61 : vector<8x128xf32>
    %64 = vector.broadcast %cst_36 : f32 to vector<8x128xf32>
    %65 = arith.minimumf %64, %63 : vector<8x128xf32>
    %66 = arith.addf %11, %40 : vector<8x128xf32>
    %cst_37 = arith.constant 1.23456775E-4 : f32
    %cst_38 = arith.constant 179.999756 : f32
    %67 = vector.broadcast %cst_37 : f32 to vector<8x128xf32>
    %68 = arith.maximumf %67, %66 : vector<8x128xf32>
    %69 = vector.broadcast %cst_38 : f32 to vector<8x128xf32>
    %70 = arith.minimumf %69, %68 : vector<8x128xf32>
    %71 = arith.addf %13, %40 : vector<8x128xf32>
    %cst_39 = arith.constant 1.23456775E-4 : f32
    %cst_40 = arith.constant 179.999756 : f32
    %72 = vector.broadcast %cst_39 : f32 to vector<8x128xf32>
    %73 = arith.maximumf %72, %71 : vector<8x128xf32>
    %74 = vector.broadcast %cst_40 : f32 to vector<8x128xf32>
    %75 = arith.minimumf %74, %73 : vector<8x128xf32>
    %76 = arith.addf %15, %40 : vector<8x128xf32>
    %cst_41 = arith.constant 1.23456775E-4 : f32
    %cst_42 = arith.constant 179.999756 : f32
    %77 = vector.broadcast %cst_41 : f32 to vector<8x128xf32>
    %78 = arith.maximumf %77, %76 : vector<8x128xf32>
    %79 = vector.broadcast %cst_42 : f32 to vector<8x128xf32>
    %80 = arith.minimumf %79, %78 : vector<8x128xf32>
    %cst_43 = arith.constant 0.0174532924 : f32
    %81 = vector.broadcast %cst_43 : f32 to vector<8x128xf32>
    %82 = arith.mulf %50, %81 : vector<8x128xf32>
    %83 = math.absf %82 : vector<8x128xf32>
    %cst_44 = arith.constant 3.14159274 : f32
    %84 = vector.broadcast %cst_44 : f32 to vector<8x128xf32>
    %85 = arith.cmpf ogt, %83, %84 : vector<8x128xf32>
    %cst_45 = arith.constant 6.28318548 : f32
    %86 = vector.broadcast %cst_45 : f32 to vector<8x128xf32>
    %87 = arith.subf %86, %83 : vector<8x128xf32>
    %88 = arith.select %85, %87, %83 : vector<8x128xi1>, vector<8x128xf32>
    %cst_46 = arith.constant 1.57079637 : f32
    %89 = vector.broadcast %cst_46 : f32 to vector<8x128xf32>
    %90 = arith.cmpf ogt, %88, %89 : vector<8x128xf32>
    %cst_47 = arith.constant 3.14159274 : f32
    %91 = vector.broadcast %cst_47 : f32 to vector<8x128xf32>
    %92 = arith.subf %91, %88 : vector<8x128xf32>
    %93 = arith.select %90, %92, %88 : vector<8x128xi1>, vector<8x128xf32>
    %94 = arith.mulf %93, %93 : vector<8x128xf32>
    %cst_48 = arith.constant -2.50521079E-8 : f32
    %95 = vector.broadcast %cst_48 : f32 to vector<8x128xf32>
    %96 = arith.mulf %95, %94 : vector<8x128xf32>
    %cst_49 = arith.constant 2.75573188E-6 : f32
    %97 = vector.broadcast %cst_49 : f32 to vector<8x128xf32>
    %98 = arith.addf %96, %97 : vector<8x128xf32>
    %99 = arith.mulf %98, %94 : vector<8x128xf32>
    %cst_50 = arith.constant 1.98412701E-4 : f32
    %100 = vector.broadcast %cst_50 : f32 to vector<8x128xf32>
    %101 = arith.subf %99, %100 : vector<8x128xf32>
    %102 = arith.mulf %101, %94 : vector<8x128xf32>
    %cst_51 = arith.constant 0.00833333377 : f32
    %103 = vector.broadcast %cst_51 : f32 to vector<8x128xf32>
    %104 = arith.addf %102, %103 : vector<8x128xf32>
    %105 = arith.mulf %104, %94 : vector<8x128xf32>
    %cst_52 = arith.constant 0.166666672 : f32
    %106 = vector.broadcast %cst_52 : f32 to vector<8x128xf32>
    %107 = arith.subf %105, %106 : vector<8x128xf32>
    %108 = arith.mulf %107, %94 : vector<8x128xf32>
    %cst_53 = arith.constant 1.000000e+00 : f32
    %109 = vector.broadcast %cst_53 : f32 to vector<8x128xf32>
    %110 = arith.addf %108, %109 : vector<8x128xf32>
    %111 = arith.mulf %110, %93 : vector<8x128xf32>
    %cst_54 = arith.constant 2.08767559E-9 : f32
    %112 = vector.broadcast %cst_54 : f32 to vector<8x128xf32>
    %113 = arith.mulf %112, %94 : vector<8x128xf32>
    %cst_55 = arith.constant 2.755732E-7 : f32
    %114 = vector.broadcast %cst_55 : f32 to vector<8x128xf32>
    %115 = arith.subf %113, %114 : vector<8x128xf32>
    %116 = arith.mulf %115, %94 : vector<8x128xf32>
    %cst_56 = arith.constant 2.48015876E-5 : f32
    %117 = vector.broadcast %cst_56 : f32 to vector<8x128xf32>
    %118 = arith.addf %116, %117 : vector<8x128xf32>
    %119 = arith.mulf %118, %94 : vector<8x128xf32>
    %cst_57 = arith.constant 0.00138888892 : f32
    %120 = vector.broadcast %cst_57 : f32 to vector<8x128xf32>
    %121 = arith.subf %119, %120 : vector<8x128xf32>
    %122 = arith.mulf %121, %94 : vector<8x128xf32>
    %cst_58 = arith.constant 0.0416666679 : f32
    %123 = vector.broadcast %cst_58 : f32 to vector<8x128xf32>
    %124 = arith.addf %122, %123 : vector<8x128xf32>
    %125 = arith.mulf %124, %94 : vector<8x128xf32>
    %cst_59 = arith.constant 5.000000e-01 : f32
    %126 = vector.broadcast %cst_59 : f32 to vector<8x128xf32>
    %127 = arith.subf %125, %126 : vector<8x128xf32>
    %128 = arith.mulf %127, %94 : vector<8x128xf32>
    %cst_60 = arith.constant 1.000000e+00 : f32
    %129 = vector.broadcast %cst_60 : f32 to vector<8x128xf32>
    %130 = arith.addf %128, %129 : vector<8x128xf32>
    %cst_61 = arith.constant 0.000000e+00 : f32
    %131 = vector.broadcast %cst_61 : f32 to vector<8x128xf32>
    %132 = arith.subf %131, %130 : vector<8x128xf32>
    %133 = arith.select %90, %132, %130 : vector<8x128xi1>, vector<8x128xf32>
    %cst_62 = arith.constant 0.000000e+00 : f32
    %134 = vector.broadcast %cst_62 : f32 to vector<8x128xf32>
    %135 = arith.subf %134, %111 : vector<8x128xf32>
    %136 = arith.select %85, %135, %111 : vector<8x128xi1>, vector<8x128xf32>
    %cst_63 = arith.constant 0.000000e+00 : f32
    %137 = vector.broadcast %cst_63 : f32 to vector<8x128xf32>
    %138 = arith.cmpf olt, %82, %137 : vector<8x128xf32>
    %cst_64 = arith.constant 0.000000e+00 : f32
    %139 = vector.broadcast %cst_64 : f32 to vector<8x128xf32>
    %140 = arith.subf %139, %136 : vector<8x128xf32>
    %141 = arith.select %138, %140, %136 : vector<8x128xi1>, vector<8x128xf32>
    %cst_65 = arith.constant 0.0174532924 : f32
    %142 = vector.broadcast %cst_65 : f32 to vector<8x128xf32>
    %143 = arith.mulf %70, %142 : vector<8x128xf32>
    %144 = math.absf %143 : vector<8x128xf32>
    %cst_66 = arith.constant 3.14159274 : f32
    %145 = vector.broadcast %cst_66 : f32 to vector<8x128xf32>
    %146 = arith.cmpf ogt, %144, %145 : vector<8x128xf32>
    %cst_67 = arith.constant 6.28318548 : f32
    %147 = vector.broadcast %cst_67 : f32 to vector<8x128xf32>
    %148 = arith.subf %147, %144 : vector<8x128xf32>
    %149 = arith.select %146, %148, %144 : vector<8x128xi1>, vector<8x128xf32>
    %cst_68 = arith.constant 1.57079637 : f32
    %150 = vector.broadcast %cst_68 : f32 to vector<8x128xf32>
    %151 = arith.cmpf ogt, %149, %150 : vector<8x128xf32>
    %cst_69 = arith.constant 3.14159274 : f32
    %152 = vector.broadcast %cst_69 : f32 to vector<8x128xf32>
    %153 = arith.subf %152, %149 : vector<8x128xf32>
    %154 = arith.select %151, %153, %149 : vector<8x128xi1>, vector<8x128xf32>
    %155 = arith.mulf %154, %154 : vector<8x128xf32>
    %cst_70 = arith.constant -2.50521079E-8 : f32
    %156 = vector.broadcast %cst_70 : f32 to vector<8x128xf32>
    %157 = arith.mulf %156, %155 : vector<8x128xf32>
    %cst_71 = arith.constant 2.75573188E-6 : f32
    %158 = vector.broadcast %cst_71 : f32 to vector<8x128xf32>
    %159 = arith.addf %157, %158 : vector<8x128xf32>
    %160 = arith.mulf %159, %155 : vector<8x128xf32>
    %cst_72 = arith.constant 1.98412701E-4 : f32
    %161 = vector.broadcast %cst_72 : f32 to vector<8x128xf32>
    %162 = arith.subf %160, %161 : vector<8x128xf32>
    %163 = arith.mulf %162, %155 : vector<8x128xf32>
    %cst_73 = arith.constant 0.00833333377 : f32
    %164 = vector.broadcast %cst_73 : f32 to vector<8x128xf32>
    %165 = arith.addf %163, %164 : vector<8x128xf32>
    %166 = arith.mulf %165, %155 : vector<8x128xf32>
    %cst_74 = arith.constant 0.166666672 : f32
    %167 = vector.broadcast %cst_74 : f32 to vector<8x128xf32>
    %168 = arith.subf %166, %167 : vector<8x128xf32>
    %169 = arith.mulf %168, %155 : vector<8x128xf32>
    %cst_75 = arith.constant 1.000000e+00 : f32
    %170 = vector.broadcast %cst_75 : f32 to vector<8x128xf32>
    %171 = arith.addf %169, %170 : vector<8x128xf32>
    %172 = arith.mulf %171, %154 : vector<8x128xf32>
    %cst_76 = arith.constant 2.08767559E-9 : f32
    %173 = vector.broadcast %cst_76 : f32 to vector<8x128xf32>
    %174 = arith.mulf %173, %155 : vector<8x128xf32>
    %cst_77 = arith.constant 2.755732E-7 : f32
    %175 = vector.broadcast %cst_77 : f32 to vector<8x128xf32>
    %176 = arith.subf %174, %175 : vector<8x128xf32>
    %177 = arith.mulf %176, %155 : vector<8x128xf32>
    %cst_78 = arith.constant 2.48015876E-5 : f32
    %178 = vector.broadcast %cst_78 : f32 to vector<8x128xf32>
    %179 = arith.addf %177, %178 : vector<8x128xf32>
    %180 = arith.mulf %179, %155 : vector<8x128xf32>
    %cst_79 = arith.constant 0.00138888892 : f32
    %181 = vector.broadcast %cst_79 : f32 to vector<8x128xf32>
    %182 = arith.subf %180, %181 : vector<8x128xf32>
    %183 = arith.mulf %182, %155 : vector<8x128xf32>
    %cst_80 = arith.constant 0.0416666679 : f32
    %184 = vector.broadcast %cst_80 : f32 to vector<8x128xf32>
    %185 = arith.addf %183, %184 : vector<8x128xf32>
    %186 = arith.mulf %185, %155 : vector<8x128xf32>
    %cst_81 = arith.constant 5.000000e-01 : f32
    %187 = vector.broadcast %cst_81 : f32 to vector<8x128xf32>
    %188 = arith.subf %186, %187 : vector<8x128xf32>
    %189 = arith.mulf %188, %155 : vector<8x128xf32>
    %cst_82 = arith.constant 1.000000e+00 : f32
    %190 = vector.broadcast %cst_82 : f32 to vector<8x128xf32>
    %191 = arith.addf %189, %190 : vector<8x128xf32>
    %cst_83 = arith.constant 0.000000e+00 : f32
    %192 = vector.broadcast %cst_83 : f32 to vector<8x128xf32>
    %193 = arith.subf %192, %191 : vector<8x128xf32>
    %194 = arith.select %151, %193, %191 : vector<8x128xi1>, vector<8x128xf32>
    %cst_84 = arith.constant 0.000000e+00 : f32
    %195 = vector.broadcast %cst_84 : f32 to vector<8x128xf32>
    %196 = arith.subf %195, %172 : vector<8x128xf32>
    %197 = arith.select %146, %196, %172 : vector<8x128xi1>, vector<8x128xf32>
    %cst_85 = arith.constant 0.000000e+00 : f32
    %198 = vector.broadcast %cst_85 : f32 to vector<8x128xf32>
    %199 = arith.cmpf olt, %143, %198 : vector<8x128xf32>
    %cst_86 = arith.constant 0.000000e+00 : f32
    %200 = vector.broadcast %cst_86 : f32 to vector<8x128xf32>
    %201 = arith.subf %200, %197 : vector<8x128xf32>
    %202 = arith.select %199, %201, %197 : vector<8x128xi1>, vector<8x128xf32>
    %203 = arith.subf %45, %65 : vector<8x128xf32>
    %cst_87 = arith.constant 0.0174532924 : f32
    %204 = vector.broadcast %cst_87 : f32 to vector<8x128xf32>
    %205 = arith.mulf %203, %204 : vector<8x128xf32>
    %206 = math.absf %205 : vector<8x128xf32>
    %cst_88 = arith.constant 3.14159274 : f32
    %207 = vector.broadcast %cst_88 : f32 to vector<8x128xf32>
    %208 = arith.cmpf ogt, %206, %207 : vector<8x128xf32>
    %cst_89 = arith.constant 6.28318548 : f32
    %209 = vector.broadcast %cst_89 : f32 to vector<8x128xf32>
    %210 = arith.subf %209, %206 : vector<8x128xf32>
    %211 = arith.select %208, %210, %206 : vector<8x128xi1>, vector<8x128xf32>
    %cst_90 = arith.constant 1.57079637 : f32
    %212 = vector.broadcast %cst_90 : f32 to vector<8x128xf32>
    %213 = arith.cmpf ogt, %211, %212 : vector<8x128xf32>
    %cst_91 = arith.constant 3.14159274 : f32
    %214 = vector.broadcast %cst_91 : f32 to vector<8x128xf32>
    %215 = arith.subf %214, %211 : vector<8x128xf32>
    %216 = arith.select %213, %215, %211 : vector<8x128xi1>, vector<8x128xf32>
    %217 = arith.mulf %216, %216 : vector<8x128xf32>
    %cst_92 = arith.constant -2.50521079E-8 : f32
    %218 = vector.broadcast %cst_92 : f32 to vector<8x128xf32>
    %219 = arith.mulf %218, %217 : vector<8x128xf32>
    %cst_93 = arith.constant 2.75573188E-6 : f32
    %220 = vector.broadcast %cst_93 : f32 to vector<8x128xf32>
    %221 = arith.addf %219, %220 : vector<8x128xf32>
    %222 = arith.mulf %221, %217 : vector<8x128xf32>
    %cst_94 = arith.constant 1.98412701E-4 : f32
    %223 = vector.broadcast %cst_94 : f32 to vector<8x128xf32>
    %224 = arith.subf %222, %223 : vector<8x128xf32>
    %225 = arith.mulf %224, %217 : vector<8x128xf32>
    %cst_95 = arith.constant 0.00833333377 : f32
    %226 = vector.broadcast %cst_95 : f32 to vector<8x128xf32>
    %227 = arith.addf %225, %226 : vector<8x128xf32>
    %228 = arith.mulf %227, %217 : vector<8x128xf32>
    %cst_96 = arith.constant 0.166666672 : f32
    %229 = vector.broadcast %cst_96 : f32 to vector<8x128xf32>
    %230 = arith.subf %228, %229 : vector<8x128xf32>
    %231 = arith.mulf %230, %217 : vector<8x128xf32>
    %cst_97 = arith.constant 1.000000e+00 : f32
    %232 = vector.broadcast %cst_97 : f32 to vector<8x128xf32>
    %233 = arith.addf %231, %232 : vector<8x128xf32>
    %234 = arith.mulf %233, %216 : vector<8x128xf32>
    %cst_98 = arith.constant 2.08767559E-9 : f32
    %235 = vector.broadcast %cst_98 : f32 to vector<8x128xf32>
    %236 = arith.mulf %235, %217 : vector<8x128xf32>
    %cst_99 = arith.constant 2.755732E-7 : f32
    %237 = vector.broadcast %cst_99 : f32 to vector<8x128xf32>
    %238 = arith.subf %236, %237 : vector<8x128xf32>
    %239 = arith.mulf %238, %217 : vector<8x128xf32>
    %cst_100 = arith.constant 2.48015876E-5 : f32
    %240 = vector.broadcast %cst_100 : f32 to vector<8x128xf32>
    %241 = arith.addf %239, %240 : vector<8x128xf32>
    %242 = arith.mulf %241, %217 : vector<8x128xf32>
    %cst_101 = arith.constant 0.00138888892 : f32
    %243 = vector.broadcast %cst_101 : f32 to vector<8x128xf32>
    %244 = arith.subf %242, %243 : vector<8x128xf32>
    %245 = arith.mulf %244, %217 : vector<8x128xf32>
    %cst_102 = arith.constant 0.0416666679 : f32
    %246 = vector.broadcast %cst_102 : f32 to vector<8x128xf32>
    %247 = arith.addf %245, %246 : vector<8x128xf32>
    %248 = arith.mulf %247, %217 : vector<8x128xf32>
    %cst_103 = arith.constant 5.000000e-01 : f32
    %249 = vector.broadcast %cst_103 : f32 to vector<8x128xf32>
    %250 = arith.subf %248, %249 : vector<8x128xf32>
    %251 = arith.mulf %250, %217 : vector<8x128xf32>
    %cst_104 = arith.constant 1.000000e+00 : f32
    %252 = vector.broadcast %cst_104 : f32 to vector<8x128xf32>
    %253 = arith.addf %251, %252 : vector<8x128xf32>
    %cst_105 = arith.constant 0.000000e+00 : f32
    %254 = vector.broadcast %cst_105 : f32 to vector<8x128xf32>
    %255 = arith.subf %254, %253 : vector<8x128xf32>
    %256 = arith.select %213, %255, %253 : vector<8x128xi1>, vector<8x128xf32>
    %cst_106 = arith.constant 0.000000e+00 : f32
    %257 = vector.broadcast %cst_106 : f32 to vector<8x128xf32>
    %258 = arith.subf %257, %234 : vector<8x128xf32>
    %259 = arith.select %208, %258, %234 : vector<8x128xi1>, vector<8x128xf32>
    %cst_107 = arith.constant 0.000000e+00 : f32
    %260 = vector.broadcast %cst_107 : f32 to vector<8x128xf32>
    %261 = arith.cmpf olt, %205, %260 : vector<8x128xf32>
    %cst_108 = arith.constant 0.000000e+00 : f32
    %262 = vector.broadcast %cst_108 : f32 to vector<8x128xf32>
    %263 = arith.subf %262, %259 : vector<8x128xf32>
    %264 = arith.select %261, %263, %259 : vector<8x128xi1>, vector<8x128xf32>
    %cst_109 = arith.constant 0.0174532924 : f32
    %265 = vector.broadcast %cst_109 : f32 to vector<8x128xf32>
    %266 = arith.mulf %55, %265 : vector<8x128xf32>
    %267 = arith.mulf %141, %266 : vector<8x128xf32>
    %cst_110 = arith.constant 0.0174532924 : f32
    %268 = vector.broadcast %cst_110 : f32 to vector<8x128xf32>
    %269 = arith.mulf %60, %268 : vector<8x128xf32>
    %cst_111 = arith.constant 0.0174532924 : f32
    %270 = vector.broadcast %cst_111 : f32 to vector<8x128xf32>
    %271 = arith.mulf %75, %270 : vector<8x128xf32>
    %272 = arith.mulf %202, %271 : vector<8x128xf32>
    %cst_112 = arith.constant 0.0174532924 : f32
    %273 = vector.broadcast %cst_112 : f32 to vector<8x128xf32>
    %274 = arith.mulf %80, %273 : vector<8x128xf32>
    %275 = arith.mulf %269, %269 : vector<8x128xf32>
    %cst_113 = arith.constant 0.0833333358 : f32
    %276 = vector.broadcast %cst_113 : f32 to vector<8x128xf32>
    %277 = arith.mulf %275, %276 : vector<8x128xf32>
    %cst_114 = arith.constant 9.99999997E-7 : f32
    %278 = vector.broadcast %cst_114 : f32 to vector<8x128xf32>
    %279 = arith.addf %277, %278 : vector<8x128xf32>
    %280 = arith.mulf %267, %267 : vector<8x128xf32>
    %cst_115 = arith.constant 0.0833333358 : f32
    %281 = vector.broadcast %cst_115 : f32 to vector<8x128xf32>
    %282 = arith.mulf %280, %281 : vector<8x128xf32>
    %cst_116 = arith.constant 9.99999997E-7 : f32
    %283 = vector.broadcast %cst_116 : f32 to vector<8x128xf32>
    %284 = arith.addf %282, %283 : vector<8x128xf32>
    %285 = tpu.reciprocal %279 {approx = true} : vector<8x128xf32> -> vector<8x128xf32>
    %286 = arith.mulf %279, %285 : vector<8x128xf32>
    %cst_117 = arith.constant 2.000000e+00 : f32
    %287 = vector.broadcast %cst_117 : f32 to vector<8x128xf32>
    %288 = arith.subf %287, %286 : vector<8x128xf32>
    %289 = arith.mulf %285, %288 : vector<8x128xf32>
    %290 = tpu.reciprocal %284 {approx = true} : vector<8x128xf32> -> vector<8x128xf32>
    %291 = arith.mulf %284, %290 : vector<8x128xf32>
    %cst_118 = arith.constant 2.000000e+00 : f32
    %292 = vector.broadcast %cst_118 : f32 to vector<8x128xf32>
    %293 = arith.subf %292, %291 : vector<8x128xf32>
    %294 = arith.mulf %290, %293 : vector<8x128xf32>
    %295 = arith.addf %289, %294 : vector<8x128xf32>
    %cst_119 = arith.constant 5.000000e-01 : f32
    %296 = vector.broadcast %cst_119 : f32 to vector<8x128xf32>
    %297 = arith.mulf %296, %295 : vector<8x128xf32>
    %298 = arith.subf %294, %289 : vector<8x128xf32>
    %cst_120 = arith.constant 2.500000e-01 : f32
    %299 = vector.broadcast %cst_120 : f32 to vector<8x128xf32>
    %300 = arith.mulf %299, %298 : vector<8x128xf32>
    %301 = math.absf %300 : vector<8x128xf32>
    %302 = arith.mulf %274, %274 : vector<8x128xf32>
    %cst_121 = arith.constant 0.0833333358 : f32
    %303 = vector.broadcast %cst_121 : f32 to vector<8x128xf32>
    %304 = arith.mulf %302, %303 : vector<8x128xf32>
    %cst_122 = arith.constant 9.99999997E-7 : f32
    %305 = vector.broadcast %cst_122 : f32 to vector<8x128xf32>
    %306 = arith.addf %304, %305 : vector<8x128xf32>
    %307 = arith.mulf %272, %272 : vector<8x128xf32>
    %cst_123 = arith.constant 0.0833333358 : f32
    %308 = vector.broadcast %cst_123 : f32 to vector<8x128xf32>
    %309 = arith.mulf %307, %308 : vector<8x128xf32>
    %cst_124 = arith.constant 9.99999997E-7 : f32
    %310 = vector.broadcast %cst_124 : f32 to vector<8x128xf32>
    %311 = arith.addf %309, %310 : vector<8x128xf32>
    %312 = tpu.reciprocal %306 {approx = true} : vector<8x128xf32> -> vector<8x128xf32>
    %313 = arith.mulf %306, %312 : vector<8x128xf32>
    %cst_125 = arith.constant 2.000000e+00 : f32
    %314 = vector.broadcast %cst_125 : f32 to vector<8x128xf32>
    %315 = arith.subf %314, %313 : vector<8x128xf32>
    %316 = arith.mulf %312, %315 : vector<8x128xf32>
    %317 = tpu.reciprocal %311 {approx = true} : vector<8x128xf32> -> vector<8x128xf32>
    %318 = arith.mulf %311, %317 : vector<8x128xf32>
    %cst_126 = arith.constant 2.000000e+00 : f32
    %319 = vector.broadcast %cst_126 : f32 to vector<8x128xf32>
    %320 = arith.subf %319, %318 : vector<8x128xf32>
    %321 = arith.mulf %317, %320 : vector<8x128xf32>
    %322 = arith.addf %316, %321 : vector<8x128xf32>
    %cst_127 = arith.constant 5.000000e-01 : f32
    %323 = vector.broadcast %cst_127 : f32 to vector<8x128xf32>
    %324 = arith.mulf %323, %322 : vector<8x128xf32>
    %325 = arith.subf %321, %316 : vector<8x128xf32>
    %cst_128 = arith.constant 2.500000e-01 : f32
    %326 = vector.broadcast %cst_128 : f32 to vector<8x128xf32>
    %327 = arith.mulf %326, %325 : vector<8x128xf32>
    %328 = math.absf %327 : vector<8x128xf32>
    %329 = arith.mulf %133, %194 : vector<8x128xf32>
    %330 = arith.mulf %141, %202 : vector<8x128xf32>
    %331 = arith.mulf %330, %256 : vector<8x128xf32>
    %332 = arith.addf %329, %331 : vector<8x128xf32>
    %333 = arith.mulf %141, %194 : vector<8x128xf32>
    %334 = arith.mulf %333, %256 : vector<8x128xf32>
    %335 = arith.mulf %133, %202 : vector<8x128xf32>
    %336 = arith.subf %334, %335 : vector<8x128xf32>
    %337 = arith.mulf %336, %336 : vector<8x128xf32>
    %338 = arith.mulf %141, %264 : vector<8x128xf32>
    %339 = arith.mulf %338, %338 : vector<8x128xf32>
    %340 = arith.mulf %133, %202 : vector<8x128xf32>
    %341 = arith.mulf %340, %256 : vector<8x128xf32>
    %342 = arith.mulf %141, %194 : vector<8x128xf32>
    %343 = arith.subf %341, %342 : vector<8x128xf32>
    %344 = arith.mulf %343, %343 : vector<8x128xf32>
    %345 = arith.mulf %141, %202 : vector<8x128xf32>
    %346 = arith.mulf %133, %194 : vector<8x128xf32>
    %347 = arith.mulf %346, %256 : vector<8x128xf32>
    %348 = arith.addf %345, %347 : vector<8x128xf32>
    %349 = arith.mulf %348, %348 : vector<8x128xf32>
    %350 = arith.mulf %133, %264 : vector<8x128xf32>
    %351 = arith.mulf %350, %350 : vector<8x128xf32>
    %352 = arith.mulf %202, %264 : vector<8x128xf32>
    %353 = arith.mulf %352, %352 : vector<8x128xf32>
    %354 = arith.mulf %194, %264 : vector<8x128xf32>
    %355 = arith.mulf %354, %354 : vector<8x128xf32>
    %356 = arith.mulf %256, %256 : vector<8x128xf32>
    %cst_129 = arith.constant 2.000000e+00 : f32
    %357 = vector.broadcast %cst_129 : f32 to vector<8x128xf32>
    %358 = arith.mulf %357, %301 : vector<8x128xf32>
    %359 = arith.subf %297, %358 : vector<8x128xf32>
    %cst_130 = arith.constant 2.000000e+00 : f32
    %360 = vector.broadcast %cst_130 : f32 to vector<8x128xf32>
    %361 = arith.mulf %360, %301 : vector<8x128xf32>
    %362 = arith.addf %297, %361 : vector<8x128xf32>
    %363 = arith.mulf %359, %362 : vector<8x128xf32>
    %cst_131 = arith.constant 9.99999997E-7 : f32
    %364 = vector.broadcast %cst_131 : f32 to vector<8x128xf32>
    %365 = arith.addf %363, %364 : vector<8x128xf32>
    %366 = tpu.reciprocal %365 {approx = true} : vector<8x128xf32> -> vector<8x128xf32>
    %367 = arith.mulf %365, %366 : vector<8x128xf32>
    %cst_132 = arith.constant 2.000000e+00 : f32
    %368 = vector.broadcast %cst_132 : f32 to vector<8x128xf32>
    %369 = arith.subf %368, %367 : vector<8x128xf32>
    %370 = arith.mulf %366, %369 : vector<8x128xf32>
    %371 = arith.subf %363, %297 : vector<8x128xf32>
    %cst_133 = arith.constant 6.28318548 : f32
    %372 = vector.broadcast %cst_133 : f32 to vector<8x128xf32>
    %373 = arith.mulf %372, %371 : vector<8x128xf32>
    %cst_134 = arith.constant 0.000000e+00 : f32
    %374 = vector.broadcast %cst_134 : f32 to vector<8x128xf32>
    %375 = arith.maximumf %373, %374 : vector<8x128xf32>
    %cst_135 = arith.constant 9.99999997E-7 : f32
    %376 = vector.broadcast %cst_135 : f32 to vector<8x128xf32>
    %377 = arith.addf %375, %376 : vector<8x128xf32>
    %378 = arith.mulf %377, %370 : vector<8x128xf32>
    %cst_136 = arith.constant 0.159154937 : f32
    %379 = vector.broadcast %cst_136 : f32 to vector<8x128xf32>
    %380 = arith.mulf %378, %379 : vector<8x128xf32>
    %cst_137 = arith.constant 2.000000e+00 : f32
    %381 = vector.broadcast %cst_137 : f32 to vector<8x128xf32>
    %382 = arith.mulf %381, %297 : vector<8x128xf32>
    %cst_138 = arith.constant 2.000000e+00 : f32
    %383 = vector.broadcast %cst_138 : f32 to vector<8x128xf32>
    %384 = arith.mulf %383, %297 : vector<8x128xf32>
    %385 = arith.mulf %384, %297 : vector<8x128xf32>
    %cst_139 = arith.constant 4.000000e+00 : f32
    %386 = vector.broadcast %cst_139 : f32 to vector<8x128xf32>
    %387 = arith.mulf %386, %301 : vector<8x128xf32>
    %388 = arith.mulf %387, %301 : vector<8x128xf32>
    %389 = arith.addf %385, %388 : vector<8x128xf32>
    %390 = arith.mulf %389, %370 : vector<8x128xf32>
    %391 = arith.subf %382, %390 : vector<8x128xf32>
    %392 = arith.mulf %370, %391 : vector<8x128xf32>
    %cst_140 = arith.constant 9.99999997E-7 : f32
    %393 = vector.broadcast %cst_140 : f32 to vector<8x128xf32>
    %394 = arith.addf %301, %393 : vector<8x128xf32>
    %cst_141 = arith.constant 4.000000e+00 : f32
    %395 = vector.broadcast %cst_141 : f32 to vector<8x128xf32>
    %396 = arith.mulf %395, %394 : vector<8x128xf32>
    %397 = arith.mulf %396, %370 : vector<8x128xf32>
    %398 = arith.addf %392, %397 : vector<8x128xf32>
    %cst_142 = arith.constant 5.000000e-01 : f32
    %399 = vector.broadcast %cst_142 : f32 to vector<8x128xf32>
    %400 = arith.mulf %399, %398 : vector<8x128xf32>
    %401 = arith.subf %392, %397 : vector<8x128xf32>
    %cst_143 = arith.constant 5.000000e-01 : f32
    %402 = vector.broadcast %cst_143 : f32 to vector<8x128xf32>
    %403 = arith.mulf %402, %401 : vector<8x128xf32>
    %cst_144 = arith.constant 2.000000e+00 : f32
    %404 = vector.broadcast %cst_144 : f32 to vector<8x128xf32>
    %405 = arith.mulf %404, %328 : vector<8x128xf32>
    %406 = arith.subf %324, %405 : vector<8x128xf32>
    %cst_145 = arith.constant 2.000000e+00 : f32
    %407 = vector.broadcast %cst_145 : f32 to vector<8x128xf32>
    %408 = arith.mulf %407, %328 : vector<8x128xf32>
    %409 = arith.addf %324, %408 : vector<8x128xf32>
    %410 = arith.mulf %406, %409 : vector<8x128xf32>
    %cst_146 = arith.constant 9.99999997E-7 : f32
    %411 = vector.broadcast %cst_146 : f32 to vector<8x128xf32>
    %412 = arith.addf %410, %411 : vector<8x128xf32>
    %413 = tpu.reciprocal %412 {approx = true} : vector<8x128xf32> -> vector<8x128xf32>
    %414 = arith.mulf %412, %413 : vector<8x128xf32>
    %cst_147 = arith.constant 2.000000e+00 : f32
    %415 = vector.broadcast %cst_147 : f32 to vector<8x128xf32>
    %416 = arith.subf %415, %414 : vector<8x128xf32>
    %417 = arith.mulf %413, %416 : vector<8x128xf32>
    %418 = arith.subf %410, %324 : vector<8x128xf32>
    %cst_148 = arith.constant 6.28318548 : f32
    %419 = vector.broadcast %cst_148 : f32 to vector<8x128xf32>
    %420 = arith.mulf %419, %418 : vector<8x128xf32>
    %cst_149 = arith.constant 0.000000e+00 : f32
    %421 = vector.broadcast %cst_149 : f32 to vector<8x128xf32>
    %422 = arith.maximumf %420, %421 : vector<8x128xf32>
    %cst_150 = arith.constant 9.99999997E-7 : f32
    %423 = vector.broadcast %cst_150 : f32 to vector<8x128xf32>
    %424 = arith.addf %422, %423 : vector<8x128xf32>
    %425 = arith.mulf %424, %417 : vector<8x128xf32>
    %cst_151 = arith.constant 0.159154937 : f32
    %426 = vector.broadcast %cst_151 : f32 to vector<8x128xf32>
    %427 = arith.mulf %425, %426 : vector<8x128xf32>
    %cst_152 = arith.constant 2.000000e+00 : f32
    %428 = vector.broadcast %cst_152 : f32 to vector<8x128xf32>
    %429 = arith.mulf %428, %324 : vector<8x128xf32>
    %cst_153 = arith.constant 2.000000e+00 : f32
    %430 = vector.broadcast %cst_153 : f32 to vector<8x128xf32>
    %431 = arith.mulf %430, %324 : vector<8x128xf32>
    %432 = arith.mulf %431, %324 : vector<8x128xf32>
    %cst_154 = arith.constant 4.000000e+00 : f32
    %433 = vector.broadcast %cst_154 : f32 to vector<8x128xf32>
    %434 = arith.mulf %433, %328 : vector<8x128xf32>
    %435 = arith.mulf %434, %328 : vector<8x128xf32>
    %436 = arith.addf %432, %435 : vector<8x128xf32>
    %437 = arith.mulf %436, %417 : vector<8x128xf32>
    %438 = arith.subf %429, %437 : vector<8x128xf32>
    %439 = arith.mulf %417, %438 : vector<8x128xf32>
    %cst_155 = arith.constant 9.99999997E-7 : f32
    %440 = vector.broadcast %cst_155 : f32 to vector<8x128xf32>
    %441 = arith.addf %328, %440 : vector<8x128xf32>
    %cst_156 = arith.constant 4.000000e+00 : f32
    %442 = vector.broadcast %cst_156 : f32 to vector<8x128xf32>
    %443 = arith.mulf %442, %441 : vector<8x128xf32>
    %444 = arith.mulf %443, %417 : vector<8x128xf32>
    %445 = arith.addf %439, %444 : vector<8x128xf32>
    %cst_157 = arith.constant 5.000000e-01 : f32
    %446 = vector.broadcast %cst_157 : f32 to vector<8x128xf32>
    %447 = arith.mulf %446, %445 : vector<8x128xf32>
    %448 = arith.subf %439, %444 : vector<8x128xf32>
    %cst_158 = arith.constant 5.000000e-01 : f32
    %449 = vector.broadcast %cst_158 : f32 to vector<8x128xf32>
    %450 = arith.mulf %449, %448 : vector<8x128xf32>
    %451 = arith.subf %297, %324 : vector<8x128xf32>
    %452 = arith.mulf %412, %370 : vector<8x128xf32>
    %453 = math.log %452 : vector<8x128xf32>
    %cst_159 = arith.constant 5.000000e-01 : f32
    %454 = vector.broadcast %cst_159 : f32 to vector<8x128xf32>
    %455 = arith.mulf %454, %453 : vector<8x128xf32>
    %456 = arith.addf %451, %455 : vector<8x128xf32>
    %457 = arith.mulf %297, %332 : vector<8x128xf32>
    %458 = arith.subf %324, %457 : vector<8x128xf32>
    %459 = arith.mulf %427, %458 : vector<8x128xf32>
    %460 = arith.addf %456, %459 : vector<8x128xf32>
    %461 = arith.mulf %328, %444 : vector<8x128xf32>
    %462 = arith.addf %460, %461 : vector<8x128xf32>
    %463 = arith.mulf %427, %344 : vector<8x128xf32>
    %464 = arith.mulf %447, %349 : vector<8x128xf32>
    %465 = arith.addf %463, %464 : vector<8x128xf32>
    %466 = arith.mulf %450, %351 : vector<8x128xf32>
    %467 = arith.addf %465, %466 : vector<8x128xf32>
    %468 = arith.mulf %301, %467 : vector<8x128xf32>
    %469 = arith.subf %462, %468 : vector<8x128xf32>
    %470 = arith.mulf %427, %353 : vector<8x128xf32>
    %471 = arith.mulf %447, %355 : vector<8x128xf32>
    %472 = arith.addf %470, %471 : vector<8x128xf32>
    %473 = arith.mulf %450, %356 : vector<8x128xf32>
    %474 = arith.addf %472, %473 : vector<8x128xf32>
    %475 = arith.mulf %301, %474 : vector<8x128xf32>
    %476 = arith.addf %469, %475 : vector<8x128xf32>
    %cst_160 = arith.constant 0.000000e+00 : f32
    %477 = vector.broadcast %cst_160 : f32 to vector<8x128xf32>
    %478 = arith.subf %477, %456 : vector<8x128xf32>
    %479 = arith.mulf %324, %332 : vector<8x128xf32>
    %480 = arith.subf %297, %479 : vector<8x128xf32>
    %481 = arith.mulf %380, %480 : vector<8x128xf32>
    %482 = arith.addf %478, %481 : vector<8x128xf32>
    %483 = arith.mulf %301, %397 : vector<8x128xf32>
    %484 = arith.addf %482, %483 : vector<8x128xf32>
    %485 = arith.mulf %380, %337 : vector<8x128xf32>
    %486 = arith.mulf %400, %349 : vector<8x128xf32>
    %487 = arith.addf %485, %486 : vector<8x128xf32>
    %488 = arith.mulf %403, %355 : vector<8x128xf32>
    %489 = arith.addf %487, %488 : vector<8x128xf32>
    %490 = arith.mulf %328, %489 : vector<8x128xf32>
    %491 = arith.subf %484, %490 : vector<8x128xf32>
    %492 = arith.mulf %380, %339 : vector<8x128xf32>
    %493 = arith.mulf %400, %351 : vector<8x128xf32>
    %494 = arith.addf %492, %493 : vector<8x128xf32>
    %495 = arith.mulf %403, %356 : vector<8x128xf32>
    %496 = arith.addf %494, %495 : vector<8x128xf32>
    %497 = arith.mulf %328, %496 : vector<8x128xf32>
    %498 = arith.addf %491, %497 : vector<8x128xf32>
    %cst_161 = arith.constant 0.000000e+00 : f32
    %499 = vector.broadcast %cst_161 : f32 to vector<8x128xf32>
    %500 = arith.maximumf %476, %499 : vector<8x128xf32>
    %cst_162 = arith.constant 0.000000e+00 : f32
    %501 = vector.broadcast %cst_162 : f32 to vector<8x128xf32>
    %502 = arith.maximumf %498, %501 : vector<8x128xf32>
    %503 = arith.addf %500, %502 : vector<8x128xf32>
    %cst_163 = arith.constant 5.000000e-01 : f32
    %504 = vector.broadcast %cst_163 : f32 to vector<8x128xf32>
    %505 = arith.mulf %504, %503 : vector<8x128xf32>
    %cst_164 = arith.constant 1.000000e+00 : f32
    %506 = vector.broadcast %cst_164 : f32 to vector<8x128xf32>
    %507 = arith.addf %506, %505 : vector<8x128xf32>
    %508 = tpu.reciprocal %507 {approx = true} : vector<8x128xf32> -> vector<8x128xf32>
    %509 = arith.mulf %507, %508 : vector<8x128xf32>
    %cst_165 = arith.constant 2.000000e+00 : f32
    %510 = vector.broadcast %cst_165 : f32 to vector<8x128xf32>
    %511 = arith.subf %510, %509 : vector<8x128xf32>
    %512 = arith.mulf %508, %511 : vector<8x128xf32>
    %513 = arith.minimumf %267, %269 : vector<8x128xf32>
    %514 = arith.maximumf %267, %269 : vector<8x128xf32>
    %515 = tpu.reciprocal %514 {approx = true} : vector<8x128xf32> -> vector<8x128xf32>
    %516 = arith.mulf %514, %515 : vector<8x128xf32>
    %cst_166 = arith.constant 2.000000e+00 : f32
    %517 = vector.broadcast %cst_166 : f32 to vector<8x128xf32>
    %518 = arith.subf %517, %516 : vector<8x128xf32>
    %519 = arith.mulf %515, %518 : vector<8x128xf32>
    %520 = arith.mulf %513, %519 : vector<8x128xf32>
    %521 = arith.mulf %520, %520 : vector<8x128xf32>
    %cst_167 = arith.constant -1.172120e-02 : f32
    %522 = vector.broadcast %cst_167 : f32 to vector<8x128xf32>
    %523 = arith.mulf %522, %521 : vector<8x128xf32>
    %cst_168 = arith.constant 0.0526533201 : f32
    %524 = vector.broadcast %cst_168 : f32 to vector<8x128xf32>
    %525 = arith.addf %523, %524 : vector<8x128xf32>
    %526 = arith.mulf %525, %521 : vector<8x128xf32>
    %cst_169 = arith.constant -0.116432868 : f32
    %527 = vector.broadcast %cst_169 : f32 to vector<8x128xf32>
    %528 = arith.addf %526, %527 : vector<8x128xf32>
    %529 = arith.mulf %528, %521 : vector<8x128xf32>
    %cst_170 = arith.constant 0.193543464 : f32
    %530 = vector.broadcast %cst_170 : f32 to vector<8x128xf32>
    %531 = arith.addf %529, %530 : vector<8x128xf32>
    %532 = arith.mulf %531, %521 : vector<8x128xf32>
    %cst_171 = arith.constant -0.332623482 : f32
    %533 = vector.broadcast %cst_171 : f32 to vector<8x128xf32>
    %534 = arith.addf %532, %533 : vector<8x128xf32>
    %535 = arith.mulf %534, %521 : vector<8x128xf32>
    %cst_172 = arith.constant 0.999977231 : f32
    %536 = vector.broadcast %cst_172 : f32 to vector<8x128xf32>
    %537 = arith.addf %535, %536 : vector<8x128xf32>
    %538 = arith.mulf %537, %520 : vector<8x128xf32>
    %539 = arith.cmpf ogt, %267, %269 : vector<8x128xf32>
    %cst_173 = arith.constant 1.57079637 : f32
    %540 = vector.broadcast %cst_173 : f32 to vector<8x128xf32>
    %541 = arith.subf %540, %538 : vector<8x128xf32>
    %542 = arith.select %539, %541, %538 : vector<8x128xi1>, vector<8x128xf32>
    %543 = arith.minimumf %272, %274 : vector<8x128xf32>
    %544 = arith.maximumf %272, %274 : vector<8x128xf32>
    %545 = tpu.reciprocal %544 {approx = true} : vector<8x128xf32> -> vector<8x128xf32>
    %546 = arith.mulf %544, %545 : vector<8x128xf32>
    %cst_174 = arith.constant 2.000000e+00 : f32
    %547 = vector.broadcast %cst_174 : f32 to vector<8x128xf32>
    %548 = arith.subf %547, %546 : vector<8x128xf32>
    %549 = arith.mulf %545, %548 : vector<8x128xf32>
    %550 = arith.mulf %543, %549 : vector<8x128xf32>
    %551 = arith.mulf %550, %550 : vector<8x128xf32>
    %cst_175 = arith.constant -1.172120e-02 : f32
    %552 = vector.broadcast %cst_175 : f32 to vector<8x128xf32>
    %553 = arith.mulf %552, %551 : vector<8x128xf32>
    %cst_176 = arith.constant 0.0526533201 : f32
    %554 = vector.broadcast %cst_176 : f32 to vector<8x128xf32>
    %555 = arith.addf %553, %554 : vector<8x128xf32>
    %556 = arith.mulf %555, %551 : vector<8x128xf32>
    %cst_177 = arith.constant -0.116432868 : f32
    %557 = vector.broadcast %cst_177 : f32 to vector<8x128xf32>
    %558 = arith.addf %556, %557 : vector<8x128xf32>
    %559 = arith.mulf %558, %551 : vector<8x128xf32>
    %cst_178 = arith.constant 0.193543464 : f32
    %560 = vector.broadcast %cst_178 : f32 to vector<8x128xf32>
    %561 = arith.addf %559, %560 : vector<8x128xf32>
    %562 = arith.mulf %561, %551 : vector<8x128xf32>
    %cst_179 = arith.constant -0.332623482 : f32
    %563 = vector.broadcast %cst_179 : f32 to vector<8x128xf32>
    %564 = arith.addf %562, %563 : vector<8x128xf32>
    %565 = arith.mulf %564, %551 : vector<8x128xf32>
    %cst_180 = arith.constant 0.999977231 : f32
    %566 = vector.broadcast %cst_180 : f32 to vector<8x128xf32>
    %567 = arith.addf %565, %566 : vector<8x128xf32>
    %568 = arith.mulf %567, %550 : vector<8x128xf32>
    %569 = arith.cmpf ogt, %272, %274 : vector<8x128xf32>
    %cst_181 = arith.constant 1.57079637 : f32
    %570 = vector.broadcast %cst_181 : f32 to vector<8x128xf32>
    %571 = arith.subf %570, %568 : vector<8x128xf32>
    %572 = arith.select %569, %571, %568 : vector<8x128xi1>, vector<8x128xf32>
    %573 = arith.subf %572, %542 : vector<8x128xf32>
    %cst_182 = arith.constant 0.405284733 : f32
    %574 = vector.broadcast %cst_182 : f32 to vector<8x128xf32>
    %575 = arith.mulf %574, %573 : vector<8x128xf32>
    %576 = arith.mulf %575, %573 : vector<8x128xf32>
    %cst_183 = arith.constant 1.000000e+00 : f32
    %577 = vector.broadcast %cst_183 : f32 to vector<8x128xf32>
    %578 = arith.subf %577, %512 : vector<8x128xf32>
    %579 = arith.addf %578, %576 : vector<8x128xf32>
    %580 = tpu.reciprocal %579 {approx = true} : vector<8x128xf32> -> vector<8x128xf32>
    %581 = arith.mulf %579, %580 : vector<8x128xf32>
    %cst_184 = arith.constant 2.000000e+00 : f32
    %582 = vector.broadcast %cst_184 : f32 to vector<8x128xf32>
    %583 = arith.subf %582, %581 : vector<8x128xf32>
    %584 = arith.mulf %580, %583 : vector<8x128xf32>
    %585 = arith.mulf %576, %584 : vector<8x128xf32>
    %cst_185 = arith.constant 1.000000e+00 : f32
    %586 = vector.broadcast %cst_185 : f32 to vector<8x128xf32>
    %587 = arith.subf %586, %512 : vector<8x128xf32>
    %588 = arith.mulf %585, %576 : vector<8x128xf32>
    %589 = arith.addf %587, %588 : vector<8x128xf32>
    %c1024_i32 = arith.constant 1024 : i32
    %590 = arith.muli %arg0, %c1024_i32 : i32
    %591 = tpu.iota {dimensions = array<i32: 0>} : vector<8x128xi32>
    %592 = tpu.iota {dimensions = array<i32: 1>} : vector<8x128xi32>
    %c128_i32 = arith.constant 128 : i32
    %593 = vector.broadcast %c128_i32 : i32 to vector<8x128xi32>
    %594 = arith.muli %591, %593 : vector<8x128xi32>
    %595 = vector.broadcast %590 : i32 to vector<8x128xi32>
    %596 = arith.addi %595, %594 : vector<8x128xi32>
    %597 = arith.addi %596, %592 : vector<8x128xi32>
    %c8_i32 = arith.constant 8 : i32
    %598 = vector.broadcast %c8_i32 : i32 to vector<8x128xi32>
    %599 = arith.cmpi slt, %597, %598 : vector<8x128xi32>
    %cst_186 = arith.constant 0.000000e+00 : f32
    %600 = vector.broadcast %cst_186 : f32 to vector<8x128xf32>
    %601 = arith.select %599, %589, %600 : vector<8x128xi1>, vector<8x128xf32>
    %602 = vector.shape_cast %601 : vector<8x128xf32> to vector<1x8x128xf32>
    %cst_187 = arith.constant dense<0.000000e+00> : vector<8x128xf32>
    %603 = vector.multi_reduction <add>, %602, %cst_187 [0] : vector<1x8x128xf32> to vector<8x128xf32>
    %c0_188 = arith.constant 0 : index
    %c0_189 = arith.constant 0 : index
    %c0_190 = arith.constant 0 : index
    %604 = vector.load %arg3[%c0_188, %c0_189, %c0_190] : memref<1x8x128xf32, #tpu.memory_space<vmem>>, vector<1x8x128xf32>
    %605 = vector.shape_cast %604 : vector<1x8x128xf32> to vector<8x128xf32>
    %606 = vector.shape_cast %603 : vector<8x128xf32> to vector<1x8x128xf32>
    tpu.vector_store %arg3[%c0_188, %c0_189, %c0_190], %606 {strides = array<i32>} : memref<1x8x128xf32, #tpu.memory_space<vmem>>, vector<1x8x128xf32>,
    return
  }
  func.func @transform_0(%arg0: i32) -> (i32, i32, i32) {
    %c0_i32 = arith.constant 0 : i32
    %c0_i32_0 = arith.constant 0 : i32
    %c0_i32_1 = arith.constant 0 : i32
    return %c0_i32, %arg0, %c0_i32_0 : i32, i32, i32
  }
  func.func @transform_1(%arg0: i32) -> (i32, i32, i32) {
    %c0_i32 = arith.constant 0 : i32
    %c0_i32_0 = arith.constant 0 : i32
    %c0_i32_1 = arith.constant 0 : i32
    return %c0_i32, %arg0, %c0_i32_0 : i32, i32, i32
  }
  func.func @transform_2(%arg0: i32) -> (i32, i32, i32) {
    %c0_i32 = arith.constant 0 : i32
    %c0_i32_0 = arith.constant 0 : i32
    %c0_i32_1 = arith.constant 0 : i32
    return %arg0, %c0_i32, %c0_i32_0 : i32, i32, i32
  }
}

</mosaic_0001>

<llo_original>
// kernel: tpu_custom_call.1
$region0: #{tpu_custom_call.1}
  #allocation0 [shape = 'u32[]', space=smem, size = 0x4, offset = 0x4, fixed_abs, tag = 'smem constant byte address 0x4 - core index']
  #allocation1 [shape = 'u32[144,128]{1,0:T(1,128)}', space=vmem, size = 0x12000, scoped, tag = 'internal scratch']
  %s0 = inlined_call_operand.hbm [shape: f32[4,8,128], index: 0, kind: input, shape index: {}]
  %s1 = inlined_call_operand.hbm [shape: f32[4,8,128], index: 1, kind: input, shape index: {}]
  %s2 = inlined_call_operand.hbm [shape: f32[1,8,128], index: 2, kind: output, shape index: {}]
  %s3 = sld [smem:[#allocation0]]
  $region26: #{tpu_custom_call.1} parent=0
    _
  %s5 = ssub.s32 1, %s3
  %s6 = scalar_select 0, %s5, %s3
  $region1: #{tpu_custom_call.1} parent=0
    #allocation2 [shape = 'u8[16384]{0}', space=vmem, size = 0x4000, scoped, tag = 'input window, operand 0, single buffered']
    #allocation3 [shape = 's32[1]{0}', space=sflag, size = 0x4, scoped, tag = 'scoped memory for tpu_custom_call.1']
    #allocation4 [shape = 's32[1]{0}', space=sflag, size = 0x4, scoped, tag = 'scoped memory for tpu_custom_call.1']
    #allocation5 [shape = 'u8[16384]{0}', space=vmem, size = 0x4000, scoped, tag = 'input window, operand 1, single buffered']
    #allocation6 [shape = 's32[1]{0}', space=sflag, size = 0x4, scoped, tag = 'scoped memory for tpu_custom_call.1']
    #allocation7 [shape = 'u8[4096]{0}', space=vmem, size = 0x1000, scoped, tag = 'output window, operand 0, single buffered']
    %7 = vsyncpa [#allocation3], 0
    %8 = vsyncpa [#allocation6], 0
    %9 = vsyncpa [#allocation4], 0
    // Predicated region
    $region2: #{tpu_custom_call.1} parent=1 // pred_check
      _
    $region3: #{tpu_custom_call.1} parent=1 // pred_check_branch
      %11 = sbr.rel (0) target = $region5
    $region4: #{tpu_custom_call.1} parent=1 // pred_region
      %s13 = ssub.s32 512, 512
      %14 = vsyncadd [#allocation3], %s13
      %s15 = sshll.u32 [#allocation2], 4
      %s16 = int_to_ptr.vmem [resolvable:$true] %s15
      %21 = dma.hbm_to_vmem [thread:$0]  %s0, 512, %s16, [#allocation3], 128, 128, 8
    $region5: #{tpu_custom_call.1} parent=1 // pred_fallthru
      _
    // Predicated region
    $region6: #{tpu_custom_call.1} parent=1 // pred_check
      _
    $region7: #{tpu_custom_call.1} parent=1 // pred_check_branch
      %23 = sbr.rel (0) target = $region9
    $region8: #{tpu_custom_call.1} parent=1 // pred_region
      %s25 = ssub.s32 512, 512
      %26 = vsyncadd [#allocation6], %s25
      %s27 = sshll.u32 [#allocation5], 4
      %s28 = int_to_ptr.vmem [resolvable:$true] %s27
      %33 = dma.hbm_to_vmem [thread:$0]  %s1, 512, %s28, [#allocation6], 128, 128, 8
    $region9: #{tpu_custom_call.1} parent=1 // pred_fallthru
      _
    // Predicated region
    $region10: #{tpu_custom_call.1} parent=1 // pred_check
      _
    $region11: #{tpu_custom_call.1} parent=1 // pred_check_branch
      %35 = sbr.rel (0) target = $region13
    $region12: #{tpu_custom_call.1} parent=1 // pred_region
      %36 = dma.done [#allocation3], 512
    $region13: #{tpu_custom_call.1} parent=1 // pred_fallthru
      _
    // Predicated region
    $region14: #{tpu_custom_call.1} parent=1 // pred_check
      _
    $region15: #{tpu_custom_call.1} parent=1 // pred_check_branch
      %38 = sbr.rel (0) target = $region17
    $region16: #{tpu_custom_call.1} parent=1 // pred_region
      %39 = dma.done [#allocation6], 512
    $region17: #{tpu_custom_call.1} parent=1 // pred_fallthru
      _
    %v40 = vld [vmem:[#allocation2] sm:$0xff]
    %s41 = scalar_lea.vmem [#allocation2], 8
    %v42 = vld [vmem:[%s41] sm:$0xff]
    %s43 = scalar_lea.vmem [#allocation2], 16
    %v44 = vld [vmem:[%s43] sm:$0xff]
    %s45 = scalar_lea.vmem [#allocation2], 24
    %v46 = vld [vmem:[%s45] sm:$0xff]
    %v47 = vld [vmem:[#allocation5] sm:$0xff]
    %s48 = scalar_lea.vmem [#allocation5], 8
    %v49 = vld [vmem:[%s48] sm:$0xff]
    %s50 = scalar_lea.vmem [#allocation5], 16
    %v51 = vld [vmem:[%s50] sm:$0xff]
    %s52 = scalar_lea.vmem [#allocation5], 24
    %v53 = vld [vmem:[%s52] sm:$0xff]
    %v54 = vsub.f32 %v40, %v47
    %v55 = vand.u32 2147483647, %v54
    %vm56 = vcmp.lt.f32.partialorder %v55, 0.00012345678
    %v57 = vsub.f32 %v42, %v49
    %v58 = vand.u32 2147483647, %v57
    %vm59 = vcmp.lt.f32.partialorder %v58, 0.00012345678
    %vm60 = vmor %vm56, %vm59
    %v61 = vsub.f32 %v44, %v51
    %v62 = vand.u32 2147483647, %v61
    %vm63 = vcmp.lt.f32.partialorder %v62, 0.00012345678
    %vm64 = vmor %vm60, %vm63
    %v65 = vsub.f32 %v46, %v53
    %v66 = vand.u32 2147483647, %v65
    %vm67 = vcmp.lt.f32.partialorder %v66, 0.00012345678
    %vm68 = vmor %vm64, %vm67
    %v69 = vsel %vm68, -0.00024691355, 0.0
    %v70 = vsel %vm68, 0.00012345678, 0.0
    %v71 = vadd.f32 %v40, %v69
    %v72 = vmax.f32 %v71, 0.00024691355
    %v73 = vmin.f32 %v72, 359.99988
    %v74 = vadd.f32 %v42, %v69
    %v75 = vmax.f32 %v74, 0.00024691355
    %v76 = vmin.f32 %v75, 179.99988
    %v77 = vadd.f32 %v44, %v69
    %v78 = vmax.f32 %v77, 0.00024691355
    %v79 = vmin.f32 %v78, 179.99988
    %v80 = vadd.f32 %v46, %v69
    %v81 = vmax.f32 %v80, 0.00024691355
    %v82 = vmin.f32 %v81, 179.99988
    %v83 = vadd.f32 %v47, %v70
    %v84 = vmax.f32 %v83, 0.00012345678
    %v85 = vmin.f32 %v84, 359.99976
    %v86 = vadd.f32 %v49, %v70
    %v87 = vmax.f32 %v86, 0.00012345678
    %v88 = vmin.f32 %v87, 179.99976
    %v89 = vadd.f32 %v51, %v70
    %v90 = vmax.f32 %v89, 0.00012345678
    %v91 = vmin.f32 %v90, 179.99976
    %v92 = vadd.f32 %v53, %v70
    %v93 = vmax.f32 %v92, 0.00012345678
    %v94 = vmin.f32 %v93, 179.99976
    %v95 = vmul.f32 %v76, 0.017453292
    %v96 = vand.u32 2147483647, %v95
    %vm97 = vcmp.gt.f32.partialorder %v96, 3.1415927
    %v98 = vsub.f32 6.2831855, %v96
    %v99 = vsel %vm97, %v98, %v96
    %vm100 = vcmp.gt.f32.partialorder %v99, 1.5707964
    %v101 = vsub.f32 3.1415927, %v99
    %v102 = vsel %vm100, %v101, %v99
    %v103 = vmul.f32 %v102, %v102
    %v104 = vmul.f32 %v103, -2.5052108e-08
    %v105 = vadd.f32 %v104, 2.7557319e-06
    %v106 = vmul.f32 %v105, %v103
    %v107 = vsub.f32 %v106, 0.0001984127
    %v108 = vmul.f32 %v107, %v103
    %v109 = vadd.f32 %v108, 0.008333334
    %v110 = vmul.f32 %v109, %v103
    %v111 = vsub.f32 %v110, 0.16666667
    %v112 = vmul.f32 %v111, %v103
    %v113 = vadd.f32 %v112, 1.0
    %v114 = vmul.f32 %v113, %v102
    %v115 = vmul.f32 %v103, 2.0876756e-09
    %v116 = vsub.f32 %v115, 2.755732e-07
    %v117 = vmul.f32 %v116, %v103
    %v118 = vadd.f32 %v117, 2.4801588e-05
    %v119 = vmul.f32 %v118, %v103
    %v120 = vsub.f32 %v119, 0.0013888889
    %v121 = vmul.f32 %v120, %v103
    %v122 = vadd.f32 %v121, 0.041666668
    %v123 = vmul.f32 %v122, %v103
    %v124 = vsub.f32 %v123, 0.5
    %v125 = vmul.f32 %v124, %v103
    %v126 = vadd.f32 %v125, 1.0
    %v127 = vsub.f32 0.0, %v126
    %v128 = vsel %vm100, %v127, %v126
    %v129 = vsub.f32 0.0, %v114
    %v130 = vsel %vm97, %v129, %v114
    %vm131 = vcmp.lt.f32.partialorder %v95, 0.0
    %v132 = vsub.f32 0.0, %v130
    %v133 = vsel %vm131, %v132, %v130
    %v134 = vmul.f32 %v88, 0.017453292
    %v135 = vand.u32 2147483647, %v134
    %vm136 = vcmp.gt.f32.partialorder %v135, 3.1415927
    %v137 = vsub.f32 6.2831855, %v135
    %v138 = vsel %vm136, %v137, %v135
    %vm139 = vcmp.gt.f32.partialorder %v138, 1.5707964
    %v140 = vsub.f32 3.1415927, %v138
    %v141 = vsel %vm139, %v140, %v138
    %v142 = vmul.f32 %v141, %v141
    %v143 = vmul.f32 %v142, -2.5052108e-08
    %v144 = vadd.f32 %v143, 2.7557319e-06
    %v145 = vmul.f32 %v144, %v142
    %v146 = vsub.f32 %v145, 0.0001984127
    %v147 = vmul.f32 %v146, %v142
    %v148 = vadd.f32 %v147, 0.008333334
    %v149 = vmul.f32 %v148, %v142
    %v150 = vsub.f32 %v149, 0.16666667
    %v151 = vmul.f32 %v150, %v142
    %v152 = vadd.f32 %v151, 1.0
    %v153 = vmul.f32 %v152, %v141
    %v154 = vmul.f32 %v142, 2.0876756e-09
    %v155 = vsub.f32 %v154, 2.755732e-07
    %v156 = vmul.f32 %v155, %v142
    %v157 = vadd.f32 %v156, 2.4801588e-05
    %v158 = vmul.f32 %v157, %v142
    %v159 = vsub.f32 %v158, 0.0013888889
    %v160 = vmul.f32 %v159, %v142
    %v161 = vadd.f32 %v160, 0.041666668
    %v162 = vmul.f32 %v161, %v142
    %v163 = vsub.f32 %v162, 0.5
    %v164 = vmul.f32 %v163, %v142
    %v165 = vadd.f32 %v164, 1.0
    %v166 = vsub.f32 0.0, %v165
    %v167 = vsel %vm139, %v166, %v165
    %v168 = vsub.f32 0.0, %v153
    %v169 = vsel %vm136, %v168, %v153
    %vm170 = vcmp.lt.f32.partialorder %v134, 0.0
    %v171 = vsub.f32 0.0, %v169
    %v172 = vsel %vm170, %v171, %v169
    %v173 = vsub.f32 %v73, %v85
    %v174 = vmul.f32 %v173, 0.017453292
    %v175 = vand.u32 2147483647, %v174
    %vm176 = vcmp.gt.f32.partialorder %v175, 3.1415927
    %v177 = vsub.f32 6.2831855, %v175
    %v178 = vsel %vm176, %v177, %v175
    %vm179 = vcmp.gt.f32.partialorder %v178, 1.5707964
    %v180 = vsub.f32 3.1415927, %v178
    %v181 = vsel %vm179, %v180, %v178
    %v182 = vmul.f32 %v181, %v181
    %v183 = vmul.f32 %v182, -2.5052108e-08
    %v184 = vadd.f32 %v183, 2.7557319e-06
    %v185 = vmul.f32 %v184, %v182
    %v186 = vsub.f32 %v185, 0.0001984127
    %v187 = vmul.f32 %v186, %v182
    %v188 = vadd.f32 %v187, 0.008333334
    %v189 = vmul.f32 %v188, %v182
    %v190 = vsub.f32 %v189, 0.16666667
    %v191 = vmul.f32 %v190, %v182
    %v192 = vadd.f32 %v191, 1.0
    %v193 = vmul.f32 %v192, %v181
    %v194 = vmul.f32 %v182, 2.0876756e-09
    %v195 = vsub.f32 %v194, 2.755732e-07
    %v196 = vmul.f32 %v195, %v182
    %v197 = vadd.f32 %v196, 2.4801588e-05
    %v198 = vmul.f32 %v197, %v182
    %v199 = vsub.f32 %v198, 0.0013888889
    %v200 = vmul.f32 %v199, %v182
    %v201 = vadd.f32 %v200, 0.041666668
    %v202 = vmul.f32 %v201, %v182
    %v203 = vsub.f32 %v202, 0.5
    %v204 = vmul.f32 %v203, %v182
    %v205 = vadd.f32 %v204, 1.0
    %v206 = vsub.f32 0.0, %v205
    %v207 = vsel %vm179, %v206, %v205
    %v208 = vsub.f32 0.0, %v193
    %v209 = vsel %vm176, %v208, %v193
    %vm210 = vcmp.lt.f32.partialorder %v174, 0.0
    %v211 = vsub.f32 0.0, %v209
    %v212 = vsel %vm210, %v211, %v209
    %v213 = vmul.f32 %v79, 0.017453292
    %v214 = vmul.f32 %v133, %v213
    %v215 = vmul.f32 %v82, 0.017453292
    %v216 = vmul.f32 %v91, 0.017453292
    %v217 = vmul.f32 %v172, %v216
    %v218 = vmul.f32 %v94, 0.017453292
    %v219 = vmul.f32 %v215, %v215
    %v220 = vmul.f32 %v219, 0.083333336
    %v221 = vadd.f32 %v220, 1e-06
    %v222 = vmul.f32 %v214, %v214
    %v223 = vmul.f32 %v222, 0.083333336
    %v224 = vadd.f32 %v223, 1e-06
    %v225 = vrcp.pop %v221
    %v226 = vmul.f32 %v221, %v225
    %v227 = vsub.f32 2.0, %v226
    %v228 = vmul.f32 %v225, %v227
    %v229 = vrcp.pop %v224
    %v230 = vmul.f32 %v224, %v229
    %v231 = vsub.f32 2.0, %v230
    %v232 = vmul.f32 %v229, %v231
    %v233 = vadd.f32 %v228, %v232
    %v234 = vmul.f32 %v233, 0.5
    %v235 = vsub.f32 %v232, %v228
    %v236 = vmul.f32 %v235, 0.25
    %v237 = vand.u32 2147483647, %v236
    %v238 = vmul.f32 %v218, %v218
    %v239 = vmul.f32 %v238, 0.083333336
    %v240 = vadd.f32 %v239, 1e-06
    %v241 = vmul.f32 %v217, %v217
    %v242 = vmul.f32 %v241, 0.083333336
    %v243 = vadd.f32 %v242, 1e-06
    %v244 = vrcp.pop %v240
    %v245 = vmul.f32 %v240, %v244
    %v246 = vsub.f32 2.0, %v245
    %v247 = vmul.f32 %v244, %v246
    %v248 = vrcp.pop %v243
    %v249 = vmul.f32 %v243, %v248
    %v250 = vsub.f32 2.0, %v249
    %v251 = vmul.f32 %v248, %v250
    %v252 = vadd.f32 %v247, %v251
    %v253 = vmul.f32 %v252, 0.5
    %v254 = vsub.f32 %v251, %v247
    %v255 = vmul.f32 %v254, 0.25
    %v256 = vand.u32 2147483647, %v255
    %v257 = vmul.f32 %v128, %v167
    %v258 = vmul.f32 %v133, %v172
    %v259 = vmul.f32 %v258, %v207
    %v260 = vadd.f32 %v257, %v259
    %v261 = vmul.f32 %v133, %v167
    %v262 = vmul.f32 %v261, %v207
    %v263 = vmul.f32 %v128, %v172
    %v264 = vsub.f32 %v262, %v263
    %v265 = vmul.f32 %v264, %v264
    %v266 = vmul.f32 %v133, %v212
    %v267 = vmul.f32 %v266, %v266
    %v268 = vmul.f32 %v263, %v207
    %v269 = vsub.f32 %v268, %v261
    %v270 = vmul.f32 %v269, %v269
    %v271 = vmul.f32 %v257, %v207
    %v272 = vadd.f32 %v258, %v271
    %v273 = vmul.f32 %v272, %v272
    %v274 = vmul.f32 %v128, %v212
    %v275 = vmul.f32 %v274, %v274
    %v276 = vmul.f32 %v172, %v212
    %v277 = vmul.f32 %v276, %v276
    %v278 = vmul.f32 %v167, %v212
    %v279 = vmul.f32 %v278, %v278
    %v280 = vmul.f32 %v207, %v207
    %v281 = vmul.f32 %v237, 2.0
    %v282 = vsub.f32 %v234, %v281
    %v283 = vadd.f32 %v234, %v281
    %v284 = vmul.f32 %v282, %v283
    %v285 = vadd.f32 %v284, 1e-06
    %v286 = vrcp.pop %v285
    %v287 = vmul.f32 %v285, %v286
    %v288 = vsub.f32 2.0, %v287
    %v289 = vmul.f32 %v286, %v288
    %v290 = vsub.f32 %v284, %v234
    %v291 = vmul.f32 %v290, 6.2831855
    %v292 = vmax.f32 %v291, 0.0
    %v293 = vadd.f32 %v292, 1e-06
    %v294 = vmul.f32 %v293, %v289
    %v295 = vmul.f32 %v294, 0.15915494
    %v296 = vmul.f32 %v234, 2.0
    %v297 = vmul.f32 %v296, %v234
    %v298 = vmul.f32 %v237, 4.0
    %v299 = vmul.f32 %v298, %v237
    %v300 = vadd.f32 %v297, %v299
    %v301 = vmul.f32 %v300, %v289
    %v302 = vsub.f32 %v296, %v301
    %v303 = vmul.f32 %v289, %v302
    %v304 = vadd.f32 %v237, 1e-06
    %v305 = vmul.f32 %v304, 4.0
    %v306 = vmul.f32 %v305, %v289
    %v307 = vadd.f32 %v303, %v306
    %v308 = vmul.f32 %v307, 0.5
    %v309 = vsub.f32 %v303, %v306
    %v310 = vmul.f32 %v309, 0.5
    %v311 = vmul.f32 %v256, 2.0
    %v312 = vsub.f32 %v253, %v311
    %v313 = vadd.f32 %v253, %v311
    %v314 = vmul.f32 %v312, %v313
    %v315 = vadd.f32 %v314, 1e-06
    %v316 = vrcp.pop %v315
    %v317 = vmul.f32 %v315, %v316
    %v318 = vsub.f32 2.0, %v317
    %v319 = vmul.f32 %v316, %v318
    %v320 = vsub.f32 %v314, %v253
    %v321 = vmul.f32 %v320, 6.2831855
    %v322 = vmax.f32 %v321, 0.0
    %v323 = vadd.f32 %v322, 1e-06
    %v324 = vmul.f32 %v323, %v319
    %v325 = vmul.f32 %v324, 0.15915494
    %v326 = vmul.f32 %v253, 2.0
    %v327 = vmul.f32 %v326, %v253
    %v328 = vmul.f32 %v256, 4.0
    %v329 = vmul.f32 %v328, %v256
    %v330 = vadd.f32 %v327, %v329
    %v331 = vmul.f32 %v330, %v319
    %v332 = vsub.f32 %v326, %v331
    %v333 = vmul.f32 %v319, %v332
    %v334 = vadd.f32 %v256, 1e-06
    %v335 = vmul.f32 %v334, 4.0
    %v336 = vmul.f32 %v335, %v319
    %v337 = vadd.f32 %v333, %v336
    %v338 = vmul.f32 %v337, 0.5
    %v339 = vsub.f32 %v333, %v336
    %v340 = vmul.f32 %v339, 0.5
    %v341 = vsub.f32 %v234, %v253
    %v342 = vmul.f32 %v315, %v289
    %v343 = vlog2.pop %v342
    %v344 = vmul.f32 %v343, 0.6931472
    %v345 = vmul.f32 %v344, 0.5
    %v346 = vadd.f32 %v341, %v345
    %v347 = vmul.f32 %v234, %v260
    %v348 = vsub.f32 %v253, %v347
    %v349 = vmul.f32 %v325, %v348
    %v350 = vadd.f32 %v346, %v349
    %v351 = vmul.f32 %v256, %v336
    %v352 = vadd.f32 %v350, %v351
    %v353 = vmul.f32 %v325, %v270
    %v354 = vmul.f32 %v338, %v273
    %v355 = vadd.f32 %v353, %v354
    %v356 = vmul.f32 %v340, %v275
    %v357 = vadd.f32 %v355, %v356
    %v358 = vmul.f32 %v237, %v357
    %v359 = vsub.f32 %v352, %v358
    %v360 = vmul.f32 %v325, %v277
    %v361 = vmul.f32 %v338, %v279
    %v362 = vadd.f32 %v360, %v361
    %v363 = vmul.f32 %v340, %v280
    %v364 = vadd.f32 %v362, %v363
    %v365 = vmul.f32 %v237, %v364
    %v366 = vadd.f32 %v359, %v365
    %v367 = vsub.f32 0.0, %v346
    %v368 = vmul.f32 %v253, %v260
    %v369 = vsub.f32 %v234, %v368
    %v370 = vmul.f32 %v295, %v369
    %v371 = vadd.f32 %v367, %v370
    %v372 = vmul.f32 %v237, %v306
    %v373 = vadd.f32 %v371, %v372
    %v374 = vmul.f32 %v295, %v265
    %v375 = vmul.f32 %v308, %v273
    %v376 = vadd.f32 %v374, %v375
    %v377 = vmul.f32 %v310, %v279
    %v378 = vadd.f32 %v376, %v377
    %v379 = vmul.f32 %v256, %v378
    %v380 = vsub.f32 %v373, %v379
    %v381 = vmul.f32 %v295, %v267
    %v382 = vmul.f32 %v308, %v275
    %v383 = vadd.f32 %v381, %v382
    %v384 = vmul.f32 %v310, %v280
    %v385 = vadd.f32 %v383, %v384
    %v386 = vmul.f32 %v256, %v385
    %v387 = vadd.f32 %v380, %v386
    %v388 = vmax.f32 %v366, 0.0
    %v389 = vmax.f32 %v387, 0.0
    %v390 = vadd.f32 %v388, %v389
    %v391 = vmul.f32 %v390, 0.5
    %v392 = vadd.f32 %v391, 1.0
    %v393 = vrcp.pop %v392
    %v394 = vmul.f32 %v392, %v393
    %v395 = vsub.f32 2.0, %v394
    %v396 = vmul.f32 %v393, %v395
    %v397 = vmin.f32 %v214, %v215
    %v398 = vmax.f32 %v214, %v215
    %v399 = vrcp.pop %v398
    %v400 = vmul.f32 %v398, %v399
    %v401 = vsub.f32 2.0, %v400
    %v402 = vmul.f32 %v399, %v401
    %v403 = vmul.f32 %v397, %v402
    %v404 = vmul.f32 %v403, %v403
    %v405 = vmul.f32 %v404, -0.0117212
    %v406 = vadd.f32 %v405, 0.05265332
    %v407 = vmul.f32 %v406, %v404
    %v408 = vadd.f32 %v407, -0.11643287
    %v409 = vmul.f32 %v408, %v404
    %v410 = vadd.f32 %v409, 0.19354346
    %v411 = vmul.f32 %v410, %v404
    %v412 = vadd.f32 %v411, -0.33262348
    %v413 = vmul.f32 %v412, %v404
    %v414 = vadd.f32 %v413, 0.99997723
    %v415 = vmul.f32 %v414, %v403
    %vm416 = vcmp.gt.f32.partialorder %v214, %v215
    %v417 = vsub.f32 1.5707964, %v415
    %v418 = vsel %vm416, %v417, %v415
    %v419 = vmin.f32 %v217, %v218
    %v420 = vmax.f32 %v217, %v218
    %v421 = vrcp.pop %v420
    %v422 = vmul.f32 %v420, %v421
    %v423 = vsub.f32 2.0, %v422
    %v424 = vmul.f32 %v421, %v423
    %v425 = vmul.f32 %v419, %v424
    %v426 = vmul.f32 %v425, %v425
    %v427 = vmul.f32 %v426, -0.0117212
    %v428 = vadd.f32 %v427, 0.05265332
    %v429 = vmul.f32 %v428, %v426
    %v430 = vadd.f32 %v429, -0.11643287
    %v431 = vmul.f32 %v430, %v426
    %v432 = vadd.f32 %v431, 0.19354346
    %v433 = vmul.f32 %v432, %v426
    %v434 = vadd.f32 %v433, -0.33262348
    %v435 = vmul.f32 %v434, %v426
    %v436 = vadd.f32 %v435, 0.99997723
    %v437 = vmul.f32 %v436, %v425
    %vm438 = vcmp.gt.f32.partialorder %v217, %v218
    %v439 = vsub.f32 1.5707964, %v437
    %v440 = vsel %vm438, %v439, %v437
    %v441 = vsub.f32 %v440, %v418
    %v442 = vmul.f32 %v441, 0.40528473
    %v443 = vmul.f32 %v442, %v441
    %v444 = vsub.f32 1.0, %v396
    %v445 = vadd.f32 %v444, %v443
    %v446 = vrcp.pop %v445
    %v447 = vmul.f32 %v445, %v446
    %v448 = vsub.f32 2.0, %v447
    %v449 = vmul.f32 %v446, %v448
    %v450 = vmul.f32 %v443, %v449
    %v451 = vmul.f32 %v450, %v443
    %v452 = vadd.f32 %v444, %v451
    %s453 = smul.u32 0, 1024
    %v454 = vlaneseq
    %v455 = vshrl.u32 %v454, 7
    %v456 = vlaneseq
    %v457 = vand.u32 %v456, 127
    %v458 = vmul.u32 %v455, 128
    %v459 = vstv %s453
    %v460 = vadd.s32 %v459, %v458
    %v461 = vadd.s32 %v460, %v457
    %vm462 = vcmp.lt.s32.totalorder %v461, 8
    %v463 = vsel %vm462, %v452, 0.0
    %v464 = vadd.f32 %v463, 0.0
    %465 = vst [vmem:[#allocation7] sm:$0xff] %v464
    // Predicated region
    $region18: #{tpu_custom_call.1} parent=1 // pred_check
      _
    $region19: #{tpu_custom_call.1} parent=1 // pred_check_branch
      %467 = sbr.rel (0) target = $region21
    $region20: #{tpu_custom_call.1} parent=1 // pred_region
      %s469 = ssub.s32 128, 128
      %470 = vsyncadd [#allocation4], %s469
      %s472 = sshll.u32 [#allocation7], 4
      %s473 = int_to_ptr.vmem [resolvable:$true] %s472
      %475 = dma.vmem_to_hbm [thread:$0]  %s473, 128, %s2, [#allocation4]
    $region21: #{tpu_custom_call.1} parent=1 // pred_fallthru
      _
    // Predicated region
    $region22: #{tpu_custom_call.1} parent=1 // pred_check
      _
    $region23: #{tpu_custom_call.1} parent=1 // pred_check_branch
      %477 = sbr.rel (0) target = $region25
    $region24: #{tpu_custom_call.1} parent=1 // pred_region
      %478 = dma.done [#allocation4], 128
    $region25: #{tpu_custom_call.1} parent=1 // pred_fallthru
      _
    %479 = vsyncpa [#allocation3], 1
    %480 = vsyncpa [#allocation6], 1
    %481 = vsyncpa [#allocation4], 1

</llo_original>
